<compile_context>
chip_gen: v7x
topology: tpu7x:2x2x1
jax: 0.10.0
libtpu: 0.0.40
codegen_flags: <defaults>
</compile_context>

<pallas_src>
import functools

import jax
import jax.numpy as jnp
from jax import lax
from jax.experimental import pallas as pl
from jax.experimental.pallas import tpu as pltpu

_LANES = 128


def _conv3x3_relu_kernel(x_ref, w_ref, o_ref, x32_ref, patch_ref, *, wp, cin):
    """One (image, row-tile, cout-tile) grid step.

    x_ref:     (1, 1, (TH+3)*Wp, Cin)  bf16  flattened padded rows for this row tile
    w_ref:     (9*Cin, 128)            bf16  im2col weights for this Cout tile
    o_ref:     (1, 1, TH*Wp, 128)      f32   lane-dense "wide" output slab
    x32_ref:   ((TH+3)*Wp, Cin)        f32   scratch: upcast input tile
    patch_ref: (TH*Wp, 9*Cin)          f32   scratch: im2col patch slab
    """
    co = pl.program_id(2)
    m = o_ref.shape[2]  # TH * Wp rows of wide output

    # Build the im2col slab once per (image, row-tile); it is reused for every
    # Cout tile.  The Cout axis is the innermost 'arbitrary' grid axis, so for
    # a fixed (n, r) the co == 0 step always runs first on the same core.
    @pl.when(co == 0)
    def _build_patch():
        # Single full-tile load + upcast: HBM/DMA traffic stays bf16, the
        # in-kernel shifted-window relayout stays in plain f32.
        x32_ref[...] = x_ref[0, 0].astype(jnp.float32)
        # Each 3x3 tap is a contiguous sublane-shifted window of the flattened
        # (row-major, width Wp) tile — no per-tap reshape-materialized copies.
        for kh in range(3):
            for kw in range(3):
                t = kh * 3 + kw
                patch_ref[:, t * cin:(t + 1) * cin] = (
                    x32_ref[pl.ds(kh * wp + kw, m), :])

    # One fat MXU matmul (K = 9*Cin) in bf16 with f32 accumulation.
    acc = jnp.dot(patch_ref[...].astype(jnp.bfloat16), w_ref[...],
                  preferred_element_type=jnp.float32)
    # ReLU on the f32 accumulator, lane-dense (128-wide) store.
    o_ref[0, 0] = jnp.maximum(acc, 0.0).astype(o_ref.dtype)


def _pick_row_tile(h):
    cap = max(8, h // 4)
    for d in range(min(h, cap), 0, -1):
        if h % d == 0:
            return d
    return 1


def conv_relu(x_nchw, weight_oihw, *, row_tile=None):
    """F.relu(Conv2d(3x3, stride=1, pad=1, dilation=1, bias=False)(x)).

    x_nchw:      (N, Cin, H, W)    float32 (PyTorch layout)
    weight_oihw: (Cout, Cin, 3, 3) float32 (PyTorch layout)
    returns:     (N, Cout, H, W)   float32
    """
    N, Cin, H, W = x_nchw.shape
    Cout, Cin_w, KH, KW = weight_oihw.shape
    # Kernel is specialised to the module defaults.
    assert (KH, KW) == (3, 3) and Cin_w == Cin, "specialised to 3x3, stride 1, pad 1"
    pad = 1
    Hp, Wp = H + 2 * pad, W + 2 * pad

    TH = row_tile if row_tile is not None else _pick_row_tile(H)
    assert H % TH == 0, "row_tile must divide H"
    n_rt = H // TH

    Cout_p = (Cout + _LANES - 1) // _LANES * _LANES
    n_ct = Cout_p // _LANES
    out_dtype = x_nchw.dtype

    # ---- layout glue: NCHW -> NHWC, spatial pad, bf16, halo'd row tiles ----
    # TODO(synk): if the surrounding model stays NHWC, the two boundary
    # transposes (and this pad pass) can be dropped to save HBM passes.
    x_nhwc = jnp.transpose(x_nchw, (0, 2, 3, 1))
    x_pad = jnp.pad(x_nhwc, ((0, 0), (pad, pad), (pad, pad), (0, 0)))
    x_pad = x_pad.astype(jnp.bfloat16)
    # Each output row tile of TH rows needs TH+2 padded rows; one extra
    # (clamped) row keeps the shifted in-kernel slices in-bounds for the two
    # throwaway wide columns.
    row_idx = jnp.arange(n_rt)[:, None] * TH + jnp.arange(TH + 3)[None, :]
    row_idx = jnp.minimum(row_idx, Hp - 1)
    x_tiles = x_pad[:, row_idx, :, :]                       # (N, n_rt, TH+3, Wp, Cin)
    x_tiles = x_tiles.reshape(N, n_rt, (TH + 3) * Wp, Cin)

    # Weights: OIHW -> (KH*KW*Cin, Cout) im2col layout; zero-pad Cout to a
    # multiple of 128 so both the matmul N dim and the output stores are
    # lane-dense.
    w_mat = jnp.transpose(weight_oihw, (2, 3, 1, 0)).reshape(KH * KW * Cin, Cout)
    w_mat = jnp.pad(w_mat, ((0, 0), (0, Cout_p - Cout))).astype(jnp.bfloat16)

    M = TH * Wp
    kernel = functools.partial(_conv3x3_relu_kernel, wp=Wp, cin=Cin)

    out_wide = pl.pallas_call(
        kernel,
        out_shape=jax.ShapeDtypeStruct((N, n_rt, M, Cout_p), jnp.float32),
        grid_spec=pltpu.PrefetchScalarGridSpec(
            num_scalar_prefetch=0,
            grid=(N, n_rt, n_ct),
            in_specs=[
                pl.BlockSpec((1, 1, (TH + 3) * Wp, Cin),
                             lambda n, r, c: (n, r, 0, 0)),
                pl.BlockSpec((KH * KW * Cin, _LANES),
                             lambda n, r, c: (0, c)),
            ],
            out_specs=pl.BlockSpec((1, 1, M, _LANES),
                                   lambda n, r, c: (n, r, 0, c)),
            scratch_shapes=[
                pltpu.VMEM(((TH + 3) * Wp, Cin), jnp.float32),   # upcast tile
                pltpu.VMEM((M, KH * KW * Cin), jnp.float32),     # im2col slab
            ],
        ),
        compiler_params=pltpu.CompilerParams(
            dimension_semantics=("parallel", "parallel", "arbitrary"),
            vmem_limit_bytes=32 * 1024 * 1024,
        ),
    )(x_tiles, w_mat)

    # Drop the 2 garbage wide columns and the padded Cout channels; back to NCHW.
    out = out_wide.reshape(N, n_rt, TH, Wp, Cout_p)[:, :, :, :W, :Cout]
    out = out.reshape(N, H, W, Cout).astype(out_dtype)
    return jnp.transpose(out, (0, 3, 1, 2))


if __name__ == "__main__":
    key = jax.random.PRNGKey(0)
    k_x, k_w = jax.random.split(key)

    # Small shapes consistent with the module: batch=2, Cin=4, Cout=8, 16x16.
    N, Cin, Cout, H, W = 2, 4, 8, 16, 16
    x = jax.random.normal(k_x, (N, Cin, H, W), dtype=jnp.float32)
    weight = jax.random.normal(k_w, (Cout, Cin, 3, 3), dtype=jnp.float32) * 0.1

    y = conv_relu(x, weight)
    jax.block_until_ready(y)
    assert y.shape == (N, Cout, H, W)

    # Reference with the same bf16-rounded operands (the kernel feeds the MXU
    # bf16 activations/weights and accumulates in f32).
    xr = x.astype(jnp.bfloat16).astype(jnp.float32)
    wr = weight.astype(jnp.bfloat16).astype(jnp.float32)
    y_ref = lax.conv_general_dilated(
        xr, wr, window_strides=(1, 1), padding=((1, 1), (1, 1)),
        dimension_numbers=("NCHW", "OIHW", "NCHW"),
        precision=lax.Precision.HIGHEST)
    y_ref = jnp.maximum(y_ref, 0.0)
    assert jnp.allclose(y, y_ref, atol=2e-3, rtol=2e-3), \
        float(jnp.max(jnp.abs(y - y_ref)))

    print("KERNEL_OK")
</pallas_src>

<mosaic_0001>
module attributes {stable_mosaic.version = 11 : i64} {
  func.func @_conv3x3_relu_kernel(%arg0: i32, %arg1: i32, %arg2: i32, %arg3: memref<1x1x198x4xbf16, #tpu.memory_space<vmem>>, %arg4: memref<36x128xbf16, #tpu.memory_space<vmem>>, %arg5: memref<1x1x144x128xf32, #tpu.memory_space<vmem>>, %arg6: memref<198x4xf32, #tpu.memory_space<vmem>>, %arg7: memref<144x36xf32, #tpu.memory_space<vmem>>) attributes {dimension_semantics = [#tpu.dimension_semantics<parallel>, #tpu.dimension_semantics<parallel>, #tpu.dimension_semantics<arbitrary>], iteration_bounds = array<i64: 2, 2, 1>, scalar_prefetch = 0 : i64, scratch_operands = 2 : i64, tpu.core_type = #tpu.core_type<tc>, window_params = [{transform_indices = @transform_0, window_bounds = array<i64: 1, 1, 198, 4>}, {transform_indices = @transform_1, window_bounds = array<i64: 36, 128>}, {transform_indices = @transform_2, window_bounds = array<i64: 1, 1, 144, 128>}]} {
    %c0_i32 = arith.constant 0 : i32
    %0 = arith.cmpi eq, %arg2, %c0_i32 : i32
    %1 = arith.extui %0 : i1 to i32
    %c0_i32_0 = arith.constant 0 : i32
    %2 = arith.cmpi ne, %1, %c0_i32_0 : i32
    scf.if %2 {
      %c0_9 = arith.constant 0 : index
      %c0_10 = arith.constant 0 : index
      %c0_11 = arith.constant 0 : index
      %c0_12 = arith.constant 0 : index
      %12 = vector.load %arg3[%c0_9, %c0_10, %c0_11, %c0_12] : memref<1x1x198x4xbf16, #tpu.memory_space<vmem>>, vector<1x1x198x4xbf16>
      %13 = vector.shape_cast %12 : vector<1x1x198x4xbf16> to vector<198x4xbf16>
      %14 = arith.extf %13 : vector<198x4xbf16> to vector<198x4xf32>
      %c0_13 = arith.constant 0 : index
      %c0_14 = arith.constant 0 : index
      %15 = vector.load %arg6[%c0_13, %c0_14] : memref<198x4xf32, #tpu.memory_space<vmem>>, vector<198x4xf32>
      tpu.vector_store %arg6[%c0_13, %c0_14], %14 {strides = array<i32>} : memref<198x4xf32, #tpu.memory_space<vmem>>, vector<198x4xf32>,
      %c0_15 = arith.constant 0 : index
      %c0_16 = arith.constant 0 : index
      %16 = vector.load %arg6[%c0_15, %c0_16] : memref<198x4xf32, #tpu.memory_space<vmem>>, vector<144x4xf32>
      %c0_17 = arith.constant 0 : index
      %c0_18 = arith.constant 0 : index
      %17 = vector.load %arg7[%c0_17, %c0_18] : memref<144x36xf32, #tpu.memory_space<vmem>>, vector<144x4xf32>
      tpu.vector_store %arg7[%c0_17, %c0_18], %16 {strides = array<i32>} : memref<144x36xf32, #tpu.memory_space<vmem>>, vector<144x4xf32>,
      %c1 = arith.constant 1 : index
      %c0_19 = arith.constant 0 : index
      %18 = vector.load %arg6[%c1, %c0_19] : memref<198x4xf32, #tpu.memory_space<vmem>>, vector<144x4xf32>
      %c0_20 = arith.constant 0 : index
      %c4 = arith.constant 4 : index
      %19 = vector.load %arg7[%c0_20, %c4] : memref<144x36xf32, #tpu.memory_space<vmem>>, vector<144x4xf32>
      tpu.vector_store %arg7[%c0_20, %c4], %18 {strides = array<i32>} : memref<144x36xf32, #tpu.memory_space<vmem>>, vector<144x4xf32>,
      %c2 = arith.constant 2 : index
      %c0_21 = arith.constant 0 : index
      %20 = vector.load %arg6[%c2, %c0_21] : memref<198x4xf32, #tpu.memory_space<vmem>>, vector<144x4xf32>
      %c0_22 = arith.constant 0 : index
      %c8 = arith.constant 8 : index
      %21 = vector.load %arg7[%c0_22, %c8] : memref<144x36xf32, #tpu.memory_space<vmem>>, vector<144x4xf32>
      tpu.vector_store %arg7[%c0_22, %c8], %20 {strides = array<i32>} : memref<144x36xf32, #tpu.memory_space<vmem>>, vector<144x4xf32>,
      %c18 = arith.constant 18 : index
      %c0_23 = arith.constant 0 : index
      %22 = vector.load %arg6[%c18, %c0_23] : memref<198x4xf32, #tpu.memory_space<vmem>>, vector<144x4xf32>
      %c0_24 = arith.constant 0 : index
      %c12 = arith.constant 12 : index
      %23 = vector.load %arg7[%c0_24, %c12] : memref<144x36xf32, #tpu.memory_space<vmem>>, vector<144x4xf32>
      tpu.vector_store %arg7[%c0_24, %c12], %22 {strides = array<i32>} : memref<144x36xf32, #tpu.memory_space<vmem>>, vector<144x4xf32>,
      %c19 = arith.constant 19 : index
      %c0_25 = arith.constant 0 : index
      %24 = vector.load %arg6[%c19, %c0_25] : memref<198x4xf32, #tpu.memory_space<vmem>>, vector<144x4xf32>
      %c0_26 = arith.constant 0 : index
      %c16 = arith.constant 16 : index
      %25 = vector.load %arg7[%c0_26, %c16] : memref<144x36xf32, #tpu.memory_space<vmem>>, vector<144x4xf32>
      tpu.vector_store %arg7[%c0_26, %c16], %24 {strides = array<i32>} : memref<144x36xf32, #tpu.memory_space<vmem>>, vector<144x4xf32>,
      %c20 = arith.constant 20 : index
      %c0_27 = arith.constant 0 : index
      %26 = vector.load %arg6[%c20, %c0_27] : memref<198x4xf32, #tpu.memory_space<vmem>>, vector<144x4xf32>
      %c0_28 = arith.constant 0 : index
      %c20_29 = arith.constant 20 : index
      %27 = vector.load %arg7[%c0_28, %c20_29] : memref<144x36xf32, #tpu.memory_space<vmem>>, vector<144x4xf32>
      tpu.vector_store %arg7[%c0_28, %c20_29], %26 {strides = array<i32>} : memref<144x36xf32, #tpu.memory_space<vmem>>, vector<144x4xf32>,
      %c36 = arith.constant 36 : index
      %c0_30 = arith.constant 0 : index
      %28 = vector.load %arg6[%c36, %c0_30] : memref<198x4xf32, #tpu.memory_space<vmem>>, vector<144x4xf32>
      %c0_31 = arith.constant 0 : index
      %c24 = arith.constant 24 : index
      %29 = vector.load %arg7[%c0_31, %c24] : memref<144x36xf32, #tpu.memory_space<vmem>>, vector<144x4xf32>
      tpu.vector_store %arg7[%c0_31, %c24], %28 {strides = array<i32>} : memref<144x36xf32, #tpu.memory_space<vmem>>, vector<144x4xf32>,
      %c37 = arith.constant 37 : index
      %c0_32 = arith.constant 0 : index
      %30 = vector.load %arg6[%c37, %c0_32] : memref<198x4xf32, #tpu.memory_space<vmem>>, vector<144x4xf32>
      %c0_33 = arith.constant 0 : index
      %c28 = arith.constant 28 : index
      %31 = vector.load %arg7[%c0_33, %c28] : memref<144x36xf32, #tpu.memory_space<vmem>>, vector<144x4xf32>
      tpu.vector_store %arg7[%c0_33, %c28], %30 {strides = array<i32>} : memref<144x36xf32, #tpu.memory_space<vmem>>, vector<144x4xf32>,
      %c38 = arith.constant 38 : index
      %c0_34 = arith.constant 0 : index
      %32 = vector.load %arg6[%c38, %c0_34] : memref<198x4xf32, #tpu.memory_space<vmem>>, vector<144x4xf32>
      %c0_35 = arith.constant 0 : index
      %c32 = arith.constant 32 : index
      %33 = vector.load %arg7[%c0_35, %c32] : memref<144x36xf32, #tpu.memory_space<vmem>>, vector<144x4xf32>
      tpu.vector_store %arg7[%c0_35, %c32], %32 {strides = array<i32>} : memref<144x36xf32, #tpu.memory_space<vmem>>, vector<144x4xf32>,
    } else {
    }
    %c0 = arith.constant 0 : index
    %c0_1 = arith.constant 0 : index
    %3 = vector.load %arg7[%c0, %c0_1] : memref<144x36xf32, #tpu.memory_space<vmem>>, vector<144x36xf32>
    %4 = arith.truncf %3 : vector<144x36xf32> to vector<144x36xbf16>
    %c0_2 = arith.constant 0 : index
    %c0_3 = arith.constant 0 : index
    %5 = vector.load %arg4[%c0_2, %c0_3] : memref<36x128xbf16, #tpu.memory_space<vmem>>, vector<36x128xbf16>
    %cst = arith.constant dense<0.000000e+00> : vector<144x128xf32>
    %6 = tpu.matmul %4, %5, %cst {dimension_numbers = #tpu.dot_dimension_numbers<[1], [0], [0], [1], [0, 0, 1, 1], [], []>} : vector<144x36xbf16>, vector<36x128xbf16>, vector<144x128xf32> -> vector<144x128xf32>
    %cst_4 = arith.constant 0.000000e+00 : f32
    %7 = vector.broadcast %cst_4 : f32 to vector<144x128xf32>
    %8 = arith.maximumf %6, %7 : vector<144x128xf32>
    %c0_5 = arith.constant 0 : index
    %c0_6 = arith.constant 0 : index
    %c0_7 = arith.constant 0 : index
    %c0_8 = arith.constant 0 : index
    %9 = vector.load %arg5[%c0_5, %c0_6, %c0_7, %c0_8] : memref<1x1x144x128xf32, #tpu.memory_space<vmem>>, vector<1x1x144x128xf32>
    %10 = vector.shape_cast %9 : vector<1x1x144x128xf32> to vector<144x128xf32>
    %11 = vector.shape_cast %8 : vector<144x128xf32> to vector<1x1x144x128xf32>
    tpu.vector_store %arg5[%c0_5, %c0_6, %c0_7, %c0_8], %11 {strides = array<i32>} : memref<1x1x144x128xf32, #tpu.memory_space<vmem>>, vector<1x1x144x128xf32>,
    return
  }
  func.func @transform_0(%arg0: i32, %arg1: i32, %arg2: i32) -> (i32, i32, i32, i32) {
    %c0_i32 = arith.constant 0 : i32
    %c0_i32_0 = arith.constant 0 : i32
    %c0_i32_1 = arith.constant 0 : i32
    return %arg0, %arg1, %c0_i32, %c0_i32_0 : i32, i32, i32, i32
  }
  func.func @transform_1(%arg0: i32, %arg1: i32, %arg2: i32) -> (i32, i32) {
    %c0_i32 = arith.constant 0 : i32
    %c0_i32_0 = arith.constant 0 : i32
    return %c0_i32, %arg2 : i32, i32
  }
  func.func @transform_2(%arg0: i32, %arg1: i32, %arg2: i32) -> (i32, i32, i32, i32) {
    %c0_i32 = arith.constant 0 : i32
    %c0_i32_0 = arith.constant 0 : i32
    return %arg0, %arg1, %c0_i32, %arg2 : i32, i32, i32, i32
  }
}

</mosaic_0001>

<llo_original>
// kernel: tpu_custom_call.1
$region0: #{tpu_custom_call.1}
  #allocation0 [shape = 'u32[]', space=smem, size = 0x4, offset = 0x4, fixed_abs, tag = 'smem constant byte address 0x4 - core index']
  #allocation1 [shape = 'u32[144,128]{1,0:T(1,128)}', space=vmem, size = 0x12000, scoped, tag = 'internal scratch']
  #allocation2 [shape = 'f32[198,4]{1,0:T(8,128)}', space=vmem, size = 0x19000, scoped, tag = 'scratch operand']
  #allocation3 [shape = 'f32[144,36]{1,0:T(8,128)}', space=vmem, size = 0x12000, scoped, tag = 'scratch operand']
  %s0 = inlined_call_operand.vmem [shape: bf16[2,2,198,4], index: 0, kind: input, shape index: {}]
  %s1 = inlined_call_operand.vmem [shape: bf16[36,128], index: 1, kind: input, shape index: {}]
  %s2 = inlined_call_operand.hbm [shape: f32[2,2,144,128], index: 2, kind: output, shape index: {}]
  %s3 = sld [smem:[#allocation0]]
  $region45: #{tpu_custom_call.1} parent=0
    _
  %s5 = ssub.s32 1, %s3
  %s6 = scalar_select 0, %s5, %s3
  $region1: #{tpu_custom_call.1} parent=0
    #allocation4 [shape = 'u8[147456]{0}', space=vmem, size = 0x24000, scoped, tag = 'output window, operand 0']
    #allocation5 [shape = 's32[2]{0}', space=sflag, size = 0x8, scoped, tag = 'scoped memory for tpu_custom_call.1']
    %7 = vsyncpa [#allocation5], 0
    %s8 = scalar_lea.sflag [#allocation5], 1
    %9 = vsyncpa %s8, 0
    loop: start=0, step=1, limit=6
    $region2: #{tpu_custom_call.1} parent=1 // loop_pre_header
      _
    $region3: #{tpu_custom_call.1} parent=1 // loop_header
      %s11 = sphi 0, %s15
      %p12 = scmp.ge.s32.totalorder %s11, 6
      %s18 = sphi 0, %s37
      %s19 = sphi 0, %s33
      %s20 = sphi 0, %s29
      %s21 = sphi 0, %s18
      %s22 = sphi 0, %s19
      %s23 = sphi 0, %s20
      %s24 = sphi 0, %s21
      %s25 = sphi 0, %s22
      %s26 = sphi 0, %s23
      %s42 = sphi 0, %s44
      %s45 = sphi 0, %s42
      %s46 = sphi 0, %s45
      %s62 = sphi 0, %s46
      %s68 = sphi 0, %s70
      %s71 = sphi 0, %s68
      %s72 = sphi 0, %s71
      %s88 = sphi 0, %s72
      %s98 = sphi 0, %s100
      %s101 = sphi 0, %s98
      %s102 = sphi 0, %s101
      %s118 = sphi 0, %s102
    $region4: #{tpu_custom_call.1} parent=1 // loop_header_branch
      %14 = sbr.rel (%p12) target = $region8
    $region5: #{tpu_custom_call.1} parent=1 // loop_body
      %s16 = ssub.s32 %s11, 1
      %s17 = ssub.s32 %s11, 2
      %s27 = sadd.s32 1, %s20
      %p28 = scmp.ge.s32.totalorder %s27, 1
      %s29 = scalar_select %p28, 0, %s27
      %s30 = sadd.s32 1, %s19
      %s31 = scalar_select %p28, %s30, %s19
      %p32 = scmp.ge.s32.totalorder %s31, 2
      %s33 = scalar_select %p32, 0, %s31
      %s34 = sadd.s32 1, %s18
      %s35 = scalar_select %p32, %s34, %s18
      %p36 = scmp.ge.s32.totalorder %s35, 2
      %s37 = scalar_select %p36, 0, %s35
      %s38 = ssub.s32 %s18, %s37
      %s39 = ssub.s32 %s19, %s33
      %s40 = sor.u32 %s38, %s39
      %p41 = scmp.eq.s32.totalorder %s40, 0
      %s43 = sadd.s32 %s42, 1
      %s44 = scalar_select %p41, %s42, %s43
      %p47 = pneg %p41
      %p48 = scmp.eq.s32.totalorder %s11, 3
      %p49 = por %p47, %p48
      %p50 = scmp.ne.s32.totalorder %s42, %s45
      %p51 = scmp.eq.s32.totalorder %s11, 0
      %p52 = por %p50, %p51
      %p53 = scmp.ne.s32.totalorder %s42, %s45
      %p54 = scmp.eq.s32.totalorder %s16, 3
      %p55 = por %p53, %p54
      %p56 = scmp.ne.s32.totalorder %s45, %s46
      %p57 = scmp.eq.s32.totalorder %s16, 0
      %p58 = por %p56, %p57
      %p59 = scmp.ne.s32.totalorder %s45, %s46
      %p60 = scmp.eq.s32.totalorder %s17, 3
      %p61 = por %p59, %p60
      %p63 = scmp.ne.s32.totalorder %s46, %s62
      %p64 = scmp.eq.s32.totalorder %s17, 0
      %p65 = por %p63, %p64
      %s66 = ssub.s32 %s20, %s29
      %p67 = scmp.eq.s32.totalorder %s66, 0
      %s69 = sadd.s32 %s68, 1
      %s70 = scalar_select %p67, %s68, %s69
      %p73 = pneg %p67
      %p74 = scmp.eq.s32.totalorder %s11, 3
      %p75 = por %p73, %p74
      %p76 = scmp.ne.s32.totalorder %s68, %s71
      %p77 = scmp.eq.s32.totalorder %s11, 0
      %p78 = por %p76, %p77
      %p79 = scmp.ne.s32.totalorder %s68, %s71
      %p80 = scmp.eq.s32.totalorder %s16, 3
      %p81 = por %p79, %p80
      %p82 = scmp.ne.s32.totalorder %s71, %s72
      %p83 = scmp.eq.s32.totalorder %s16, 0
      %p84 = por %p82, %p83
      %p85 = scmp.ne.s32.totalorder %s71, %s72
      %p86 = scmp.eq.s32.totalorder %s17, 3
      %p87 = por %p85, %p86
      %p89 = scmp.ne.s32.totalorder %s72, %s88
      %p90 = scmp.eq.s32.totalorder %s17, 0
      %p91 = por %p89, %p90
      %s92 = ssub.s32 %s18, %s37
      %s93 = ssub.s32 %s19, %s33
      %s94 = sor.u32 %s92, %s93
      %s95 = ssub.s32 %s20, %s29
      %s96 = sor.u32 %s94, %s95
      %p97 = scmp.eq.s32.totalorder %s96, 0
      %s99 = sadd.s32 %s98, 1
      %s100 = scalar_select %p97, %s98, %s99
      %p103 = pneg %p97
      %p104 = scmp.eq.s32.totalorder %s11, 3
      %p105 = por %p103, %p104
      %p106 = scmp.ne.s32.totalorder %s98, %s101
      %p107 = scmp.eq.s32.totalorder %s11, 0
      %p108 = por %p106, %p107
      %p109 = scmp.ne.s32.totalorder %s98, %s101
      %p110 = scmp.eq.s32.totalorder %s16, 3
      %p111 = por %p109, %p110
      %p112 = scmp.ne.s32.totalorder %s101, %s102
      %p113 = scmp.eq.s32.totalorder %s16, 0
      %p114 = por %p112, %p113
      %p115 = scmp.ne.s32.totalorder %s101, %s102
      %p116 = scmp.eq.s32.totalorder %s17, 3
      %p117 = por %p115, %p116
      %p119 = scmp.ne.s32.totalorder %s102, %s118
      %p120 = scmp.eq.s32.totalorder %s17, 0
      %p121 = por %p119, %p120
      %p122 = scmp.le.s32.totalorder 1, %s11
      %p123 = scmp.lt.s32.totalorder %s11, 5
      %p124 = pnand %p122, %p123
      %p125 = pneg %p124
      // Predicated region
      $region9: #{tpu_custom_call.1} parent=5 // pred_check
        _
      $region10: #{tpu_custom_call.1} parent=5 // pred_check_branch
        %127 = sbr.rel (%p124) target = $region12
      $region11: #{tpu_custom_call.1} parent=5 // pred_region
        %s128 = ssub.s32 %s11, 1
        // Predicated region
        $region13: #{tpu_custom_call.1} parent=11 // pred_check
          %p129 = pneg %p84
        $region14: #{tpu_custom_call.1} parent=11 // pred_check_branch
          %131 = sbr.rel (%p129) target = $region16
        $region15: #{tpu_custom_call.1} parent=11 // pred_region
          %p132 = scmp.lt.s32.totalorder %s23, 0
          %s133 = scalar_select %p132, %s23, 0
          %s134 = smul.addr %s133, 4
          %s135 = scalar_lea.vmem %s1, %s134
        $region16: #{tpu_custom_call.1} parent=11 // pred_fallthru
          _
      $region12: #{tpu_custom_call.1} parent=5 // pred_fallthru
        _
      %p136 = scmp.lt.s32.totalorder %s11, 4
      // Predicated region
      $region17: #{tpu_custom_call.1} parent=5 // pred_check
        %p137 = pneg %p136
      $region18: #{tpu_custom_call.1} parent=5 // pred_check_branch
        %139 = sbr.rel (%p137) target = $region20
      $region19: #{tpu_custom_call.1} parent=5 // pred_region
        // Predicated region
        $region21: #{tpu_custom_call.1} parent=19 // pred_check
          %p140 = pneg %p52
        $region22: #{tpu_custom_call.1} parent=19 // pred_check_branch
          %142 = sbr.rel (%p140) target = $region24
        $region23: #{tpu_custom_call.1} parent=19 // pred_region
          %p143 = scmp.lt.s32.totalorder %s18, 1
          %s144 = scalar_select %p143, %s18, 1
          %p145 = scmp.lt.s32.totalorder %s19, 1
          %s146 = scalar_select %p145, %s19, 1
          %s147 = smul.addr %s146, 25
          %s148 = smul.addr %s144, 50
          %s149 = sadd.s32 %s147, %s148
          %s150 = smul.addr %s149, 4
          %s151 = scalar_lea.vmem %s0, %s150
        $region24: #{tpu_custom_call.1} parent=19 // pred_fallthru
          _
      $region20: #{tpu_custom_call.1} parent=5 // pred_fallthru
        _
      %p152 = scmp.le.s32.totalorder 1, %s11
      %p153 = scmp.lt.s32.totalorder %s11, 5
      %p154 = pnand %p152, %p153
      %p155 = pneg %p154
      // Predicated region
      $region25: #{tpu_custom_call.1} parent=5 // pred_check
        _
      $region26: #{tpu_custom_call.1} parent=5 // pred_check_branch
        %157 = sbr.rel (%p154) target = $region28
      $region27: #{tpu_custom_call.1} parent=5 // pred_region
        %s158 = ssub.s32 %s11, 1
        %p159 = scmp.lt.s32.totalorder %s21, 1
        %s160 = scalar_select %p159, %s21, 1
        %p161 = scmp.lt.s32.totalorder %s22, 1
        %s162 = scalar_select %p161, %s22, 1
        %s163 = smul.addr %s162, 25
        %s164 = smul.addr %s160, 50
        %s165 = sadd.s32 %s163, %s164
        %s166 = smul.addr %s165, 4
        %s167 = scalar_lea.vmem %s0, %s166
        %p168 = pneg %p58
        %p169 = pneg %p55
        %p170 = scmp.lt.s32.totalorder %s23, 0
        %s171 = scalar_select %p170, %s23, 0
        %s172 = smul.addr %s171, 4
        %s173 = scalar_lea.vmem %s1, %s172
        %p174 = pneg %p84
        %p175 = pneg %p81
        %p176 = pneg %p114
        %p177 = pneg %p111
        %s178 = sand.u32 %s101, 1
        %s179 = scalar_lea.sflag [#allocation5], %s178
        %s180 = sand.u32 %s101, 1
        %s181 = smul.addr %s180, 144
        %s182 = scalar_lea.vmem [#allocation4], %s181
        %p183 = scmp.lt.s32.totalorder %s21, 1
        %s184 = scalar_select %p183, %s21, 1
        %p185 = scmp.lt.s32.totalorder %s22, 1
        %s186 = scalar_select %p185, %s22, 1
        %s187 = smul.addr %s186, 25
        %s188 = smul.addr %s184, 50
        %s189 = sadd.s32 %s187, %s188
        %s190 = smul.addr %s189, 4
        %s191 = scalar_lea.vmem %s0, %s190
        %p192 = scmp.lt.s32.totalorder %s23, 0
        %s193 = scalar_select %p192, %s23, 0
        %s194 = smul.addr %s193, 4
        %s195 = scalar_lea.vmem %s1, %s194
        %p197 = scmp.eq.s32.totalorder %s23, 0
        // Predicated region
        $region29: #{tpu_custom_call.1} parent=27 // pred_check
          %p198 = pneg %p197
        $region30: #{tpu_custom_call.1} parent=27 // pred_check_branch
          %200 = sbr.rel (%p198) target = $region32
        $region31: #{tpu_custom_call.1} parent=27 // pred_region
          %v201 = vld [vmem:[%s191] sm:$0xf]
          %v202 = vld [vmem:[%s191 + $0x4] sm:$0xf]
          %v203 = vld [vmem:[%s191 + $0x8] sm:$0xf]
          %v204 = vld [vmem:[%s191 + $0xc] sm:$0xf]
          %v205 = vld [vmem:[%s191 + $0x10] sm:$0xf]
          %v206 = vld [vmem:[%s191 + $0x14] sm:$0xf]
          %v207 = vld [vmem:[%s191 + $0x18] sm:$0xf]
          %v208 = vld [vmem:[%s191 + $0x1c] sm:$0xf]
          %v209 = vld [vmem:[%s191 + $0x20] sm:$0xf]
          %v210 = vld [vmem:[%s191 + $0x24] sm:$0xf]
          %v211 = vld [vmem:[%s191 + $0x28] sm:$0xf]
          %v212 = vld [vmem:[%s191 + $0x2c] sm:$0xf]
          %v213 = vld [vmem:[%s191 + $0x30] sm:$0xf]
          %v214 = vld [vmem:[%s191 + $0x34] sm:$0xf]
          %v215 = vld [vmem:[%s191 + $0x38] sm:$0xf]
          %v216 = vld [vmem:[%s191 + $0x3c] sm:$0xf]
          %v217 = vld [vmem:[%s191 + $0x40] sm:$0xf]
          %v218 = vld [vmem:[%s191 + $0x44] sm:$0xf]
          %v219 = vld [vmem:[%s191 + $0x48] sm:$0xf]
          %v220 = vld [vmem:[%s191 + $0x4c] sm:$0xf]
          %v221 = vld [vmem:[%s191 + $0x50] sm:$0xf]
          %v222 = vld [vmem:[%s191 + $0x54] sm:$0xf]
          %v223 = vld [vmem:[%s191 + $0x58] sm:$0xf]
          %v224 = vld [vmem:[%s191 + $0x5c] sm:$0xf]
          %v225 = vld [vmem:[%s191 + $0x60] sm:$0x7]
          %v226 = vunpack.c.l.bf16 %v201
          %v227 = vunpack.c.l.bf16 %v202
          %v228 = vunpack.c.l.bf16 %v203
          %v229 = vunpack.c.l.bf16 %v204
          %v230 = vunpack.c.l.bf16 %v205
          %v231 = vunpack.c.l.bf16 %v206
          %v232 = vunpack.c.l.bf16 %v207
          %v233 = vunpack.c.l.bf16 %v208
          %v234 = vunpack.c.l.bf16 %v209
          %v235 = vunpack.c.l.bf16 %v210
          %v236 = vunpack.c.l.bf16 %v211
          %v237 = vunpack.c.l.bf16 %v212
          %v238 = vunpack.c.l.bf16 %v213
          %v239 = vunpack.c.l.bf16 %v214
          %v240 = vunpack.c.l.bf16 %v215
          %v241 = vunpack.c.l.bf16 %v216
          %v242 = vunpack.c.l.bf16 %v217
          %v243 = vunpack.c.l.bf16 %v218
          %v244 = vunpack.c.l.bf16 %v219
          %v245 = vunpack.c.l.bf16 %v220
          %v246 = vunpack.c.l.bf16 %v221
          %v247 = vunpack.c.l.bf16 %v222
          %v248 = vunpack.c.l.bf16 %v223
          %v249 = vunpack.c.l.bf16 %v224
          %v250 = vunpack.c.l.bf16 %v225
          %vm251 = vcmask 31744
          %252 = vst.msk [vmem:[#allocation2] sm:$0xff] %vm251, %v226
          %253 = vst.msk [vmem:[#allocation2 + $0x8] sm:$0xff] %vm251, %v227
          %254 = vst.msk [vmem:[#allocation2 + $0x10] sm:$0xff] %vm251, %v228
          %255 = vst.msk [vmem:[#allocation2 + $0x18] sm:$0xff] %vm251, %v229
          %256 = vst.msk [vmem:[#allocation2 + $0x20] sm:$0xff] %vm251, %v230
          %257 = vst.msk [vmem:[#allocation2 + $0x28] sm:$0xff] %vm251, %v231
          %258 = vst.msk [vmem:[#allocation2 + $0x30] sm:$0xff] %vm251, %v232
          %259 = vst.msk [vmem:[#allocation2 + $0x38] sm:$0xff] %vm251, %v233
          %260 = vst.msk [vmem:[#allocation2 + $0x40] sm:$0xff] %vm251, %v234
          %261 = vst.msk [vmem:[#allocation2 + $0x48] sm:$0xff] %vm251, %v235
          %262 = vst.msk [vmem:[#allocation2 + $0x50] sm:$0xff] %vm251, %v236
          %263 = vst.msk [vmem:[#allocation2 + $0x58] sm:$0xff] %vm251, %v237
          %264 = vst.msk [vmem:[#allocation2 + $0x60] sm:$0xff] %vm251, %v238
          %265 = vst.msk [vmem:[#allocation2 + $0x68] sm:$0xff] %vm251, %v239
          %266 = vst.msk [vmem:[#allocation2 + $0x70] sm:$0xff] %vm251, %v240
          %267 = vst.msk [vmem:[#allocation2 + $0x78] sm:$0xff] %vm251, %v241
          %268 = vst.msk [vmem:[#allocation2 + $0x80] sm:$0xff] %vm251, %v242
          %269 = vst.msk [vmem:[#allocation2 + $0x88] sm:$0xff] %vm251, %v243
          %270 = vst.msk [vmem:[#allocation2 + $0x90] sm:$0xff] %vm251, %v244
          %271 = vst.msk [vmem:[#allocation2 + $0x98] sm:$0xff] %vm251, %v245
          %272 = vst.msk [vmem:[#allocation2 + $0xa0] sm:$0xff] %vm251, %v246
          %273 = vst.msk [vmem:[#allocation2 + $0xa8] sm:$0xff] %vm251, %v247
          %274 = vst.msk [vmem:[#allocation2 + $0xb0] sm:$0xff] %vm251, %v248
          %275 = vst.msk [vmem:[#allocation2 + $0xb8] sm:$0xff] %vm251, %v249
          %vm276 = vcmask 29696
          %277 = vst.msk [vmem:[#allocation2 + $0xc0] sm:$0x3f] %vm276, %v250
          %v278 = vld [vmem:[#allocation2] sm:$0xff]
          %v279 = vld [vmem:[#allocation2 + $0x8] sm:$0xff]
          %v280 = vld [vmem:[#allocation2 + $0x10] sm:$0xff]
          %v281 = vld [vmem:[#allocation2 + $0x18] sm:$0xff]
          %v282 = vld [vmem:[#allocation2 + $0x20] sm:$0xff]
          %v283 = vld [vmem:[#allocation2 + $0x28] sm:$0xff]
          %v284 = vld [vmem:[#allocation2 + $0x30] sm:$0xff]
          %v285 = vld [vmem:[#allocation2 + $0x38] sm:$0xff]
          %v286 = vld [vmem:[#allocation2 + $0x40] sm:$0xff]
          %v287 = vld [vmem:[#allocation2 + $0x48] sm:$0xff]
          %v288 = vld [vmem:[#allocation2 + $0x50] sm:$0xff]
          %v289 = vld [vmem:[#allocation2 + $0x58] sm:$0xff]
          %v290 = vld [vmem:[#allocation2 + $0x60] sm:$0xff]
          %v291 = vld [vmem:[#allocation2 + $0x68] sm:$0xff]
          %v292 = vld [vmem:[#allocation2 + $0x70] sm:$0xff]
          %v293 = vld [vmem:[#allocation2 + $0x78] sm:$0xff]
          %v294 = vld [vmem:[#allocation2 + $0x80] sm:$0xff]
          %v295 = vld [vmem:[#allocation2 + $0x88] sm:$0xff]
          %296 = vst.msk [vmem:[#allocation3] sm:$0xff] %vm251, %v278
          %297 = vst.msk [vmem:[#allocation3 + $0x8] sm:$0xff] %vm251, %v279
          %298 = vst.msk [vmem:[#allocation3 + $0x10] sm:$0xff] %vm251, %v280
          %299 = vst.msk [vmem:[#allocation3 + $0x18] sm:$0xff] %vm251, %v281
          %300 = vst.msk [vmem:[#allocation3 + $0x20] sm:$0xff] %vm251, %v282
          %301 = vst.msk [vmem:[#allocation3 + $0x28] sm:$0xff] %vm251, %v283
          %302 = vst.msk [vmem:[#allocation3 + $0x30] sm:$0xff] %vm251, %v284
          %303 = vst.msk [vmem:[#allocation3 + $0x38] sm:$0xff] %vm251, %v285
          %304 = vst.msk [vmem:[#allocation3 + $0x40] sm:$0xff] %vm251, %v286
          %305 = vst.msk [vmem:[#allocation3 + $0x48] sm:$0xff] %vm251, %v287
          %306 = vst.msk [vmem:[#allocation3 + $0x50] sm:$0xff] %vm251, %v288
          %307 = vst.msk [vmem:[#allocation3 + $0x58] sm:$0xff] %vm251, %v289
          %308 = vst.msk [vmem:[#allocation3 + $0x60] sm:$0xff] %vm251, %v290
          %309 = vst.msk [vmem:[#allocation3 + $0x68] sm:$0xff] %vm251, %v291
          %310 = vst.msk [vmem:[#allocation3 + $0x70] sm:$0xff] %vm251, %v292
          %311 = vst.msk [vmem:[#allocation3 + $0x78] sm:$0xff] %vm251, %v293
          %312 = vst.msk [vmem:[#allocation3 + $0x80] sm:$0xff] %vm251, %v294
          %313 = vst.msk [vmem:[#allocation3 + $0x88] sm:$0xff] %vm251, %v295
          %v314 = vld [vmem:[#allocation2 + $0x1] sm:$0xff]
          %v315 = vld [vmem:[#allocation2 + $0x9] sm:$0xff]
          %v316 = vld [vmem:[#allocation2 + $0x11] sm:$0xff]
          %v317 = vld [vmem:[#allocation2 + $0x19] sm:$0xff]
          %v318 = vld [vmem:[#allocation2 + $0x21] sm:$0xff]
          %v319 = vld [vmem:[#allocation2 + $0x29] sm:$0xff]
          %v320 = vld [vmem:[#allocation2 + $0x31] sm:$0xff]
          %v321 = vld [vmem:[#allocation2 + $0x39] sm:$0xff]
          %v322 = vld [vmem:[#allocation2 + $0x41] sm:$0xff]
          %v323 = vld [vmem:[#allocation2 + $0x49] sm:$0xff]
          %v324 = vld [vmem:[#allocation2 + $0x51] sm:$0xff]
          %v325 = vld [vmem:[#allocation2 + $0x59] sm:$0xff]
          %v326 = vld [vmem:[#allocation2 + $0x61] sm:$0xff]
          %v327 = vld [vmem:[#allocation2 + $0x69] sm:$0xff]
          %v328 = vld [vmem:[#allocation2 + $0x71] sm:$0xff]
          %v329 = vld [vmem:[#allocation2 + $0x79] sm:$0xff]
          %v330 = vld [vmem:[#allocation2 + $0x81] sm:$0xff]
          %v331 = vld [vmem:[#allocation2 + $0x89] sm:$0xff]
          %350 = vrot.lane.b32.xlu0 %v314, 4
          %v351 = vpop.permute.xlu0 %350
          %352 = vrot.lane.b32.xlu0 %v315, 4
          %v353 = vpop.permute.xlu0 %352
          %354 = vrot.lane.b32.xlu0 %v316, 4
          %v355 = vpop.permute.xlu0 %354
          %356 = vrot.lane.b32.xlu0 %v317, 4
          %v357 = vpop.permute.xlu0 %356
          %358 = vrot.lane.b32.xlu0 %v318, 4
          %v359 = vpop.permute.xlu0 %358
          %360 = vrot.lane.b32.xlu0 %v319, 4
          %v361 = vpop.permute.xlu0 %360
          %362 = vrot.lane.b32.xlu0 %v320, 4
          %v363 = vpop.permute.xlu0 %362
          %364 = vrot.lane.b32.xlu0 %v321, 4
          %v365 = vpop.permute.xlu0 %364
          %366 = vrot.lane.b32.xlu0 %v322, 4
          %v367 = vpop.permute.xlu0 %366
          %368 = vrot.lane.b32.xlu0 %v323, 4
          %v369 = vpop.permute.xlu0 %368
          %370 = vrot.lane.b32.xlu0 %v324, 4
          %v371 = vpop.permute.xlu0 %370
          %372 = vrot.lane.b32.xlu0 %v325, 4
          %v373 = vpop.permute.xlu0 %372
          %374 = vrot.lane.b32.xlu0 %v326, 4
          %v375 = vpop.permute.xlu0 %374
          %376 = vrot.lane.b32.xlu0 %v327, 4
          %v377 = vpop.permute.xlu0 %376
          %378 = vrot.lane.b32.xlu0 %v328, 4
          %v379 = vpop.permute.xlu0 %378
          %380 = vrot.lane.b32.xlu0 %v329, 4
          %v381 = vpop.permute.xlu0 %380
          %382 = vrot.lane.b32.xlu0 %v330, 4
          %v383 = vpop.permute.xlu0 %382
          %384 = vrot.lane.b32.xlu0 %v331, 4
          %v385 = vpop.permute.xlu0 %384
          %vm404 = vcmask 64544
          %405 = vst.msk [vmem:[#allocation3] sm:$0xff] %vm404, %v351
          %406 = vst.msk [vmem:[#allocation3 + $0x8] sm:$0xff] %vm404, %v353
          %407 = vst.msk [vmem:[#allocation3 + $0x10] sm:$0xff] %vm404, %v355
          %408 = vst.msk [vmem:[#allocation3 + $0x18] sm:$0xff] %vm404, %v357
          %409 = vst.msk [vmem:[#allocation3 + $0x20] sm:$0xff] %vm404, %v359
          %410 = vst.msk [vmem:[#allocation3 + $0x28] sm:$0xff] %vm404, %v361
          %411 = vst.msk [vmem:[#allocation3 + $0x30] sm:$0xff] %vm404, %v363
          %412 = vst.msk [vmem:[#allocation3 + $0x38] sm:$0xff] %vm404, %v365
          %413 = vst.msk [vmem:[#allocation3 + $0x40] sm:$0xff] %vm404, %v367
          %414 = vst.msk [vmem:[#allocation3 + $0x48] sm:$0xff] %vm404, %v369
          %415 = vst.msk [vmem:[#allocation3 + $0x50] sm:$0xff] %vm404, %v371
          %416 = vst.msk [vmem:[#allocation3 + $0x58] sm:$0xff] %vm404, %v373
          %417 = vst.msk [vmem:[#allocation3 + $0x60] sm:$0xff] %vm404, %v375
          %418 = vst.msk [vmem:[#allocation3 + $0x68] sm:$0xff] %vm404, %v377
          %419 = vst.msk [vmem:[#allocation3 + $0x70] sm:$0xff] %vm404, %v379
          %420 = vst.msk [vmem:[#allocation3 + $0x78] sm:$0xff] %vm404, %v381
          %421 = vst.msk [vmem:[#allocation3 + $0x80] sm:$0xff] %vm404, %v383
          %422 = vst.msk [vmem:[#allocation3 + $0x88] sm:$0xff] %vm404, %v385
          %v423 = vld [vmem:[#allocation2 + $0x2] sm:$0xff]
          %v424 = vld [vmem:[#allocation2 + $0xa] sm:$0xff]
          %v425 = vld [vmem:[#allocation2 + $0x12] sm:$0xff]
          %v426 = vld [vmem:[#allocation2 + $0x1a] sm:$0xff]
          %v427 = vld [vmem:[#allocation2 + $0x22] sm:$0xff]
          %v428 = vld [vmem:[#allocation2 + $0x2a] sm:$0xff]
          %v429 = vld [vmem:[#allocation2 + $0x32] sm:$0xff]
          %v430 = vld [vmem:[#allocation2 + $0x3a] sm:$0xff]
          %v431 = vld [vmem:[#allocation2 + $0x42] sm:$0xff]
          %v432 = vld [vmem:[#allocation2 + $0x4a] sm:$0xff]
          %v433 = vld [vmem:[#allocation2 + $0x52] sm:$0xff]
          %v434 = vld [vmem:[#allocation2 + $0x5a] sm:$0xff]
          %v435 = vld [vmem:[#allocation2 + $0x62] sm:$0xff]
          %v436 = vld [vmem:[#allocation2 + $0x6a] sm:$0xff]
          %v437 = vld [vmem:[#allocation2 + $0x72] sm:$0xff]
          %v438 = vld [vmem:[#allocation2 + $0x7a] sm:$0xff]
          %v439 = vld [vmem:[#allocation2 + $0x82] sm:$0xff]
          %v440 = vld [vmem:[#allocation2 + $0x8a] sm:$0xff]
          %459 = vrot.lane.b32.xlu0 %v423, 8
          %v460 = vpop.permute.xlu0 %459
          %461 = vrot.lane.b32.xlu0 %v424, 8
          %v462 = vpop.permute.xlu0 %461
          %463 = vrot.lane.b32.xlu0 %v425, 8
          %v464 = vpop.permute.xlu0 %463
          %465 = vrot.lane.b32.xlu0 %v426, 8
          %v466 = vpop.permute.xlu0 %465
          %467 = vrot.lane.b32.xlu0 %v427, 8
          %v468 = vpop.permute.xlu0 %467
          %469 = vrot.lane.b32.xlu0 %v428, 8
          %v470 = vpop.permute.xlu0 %469
          %471 = vrot.lane.b32.xlu0 %v429, 8
          %v472 = vpop.permute.xlu0 %471
          %473 = vrot.lane.b32.xlu0 %v430, 8
          %v474 = vpop.permute.xlu0 %473
          %475 = vrot.lane.b32.xlu0 %v431, 8
          %v476 = vpop.permute.xlu0 %475
          %477 = vrot.lane.b32.xlu0 %v432, 8
          %v478 = vpop.permute.xlu0 %477
          %479 = vrot.lane.b32.xlu0 %v433, 8
          %v480 = vpop.permute.xlu0 %479
          %481 = vrot.lane.b32.xlu0 %v434, 8
          %v482 = vpop.permute.xlu0 %481
          %483 = vrot.lane.b32.xlu0 %v435, 8
          %v484 = vpop.permute.xlu0 %483
          %485 = vrot.lane.b32.xlu0 %v436, 8
          %v486 = vpop.permute.xlu0 %485
          %487 = vrot.lane.b32.xlu0 %v437, 8
          %v488 = vpop.permute.xlu0 %487
          %489 = vrot.lane.b32.xlu0 %v438, 8
          %v490 = vpop.permute.xlu0 %489
          %491 = vrot.lane.b32.xlu0 %v439, 8
          %v492 = vpop.permute.xlu0 %491
          %493 = vrot.lane.b32.xlu0 %v440, 8
          %v494 = vpop.permute.xlu0 %493
          %vm513 = vcmask 97344
          %514 = vst.msk [vmem:[#allocation3] sm:$0xff] %vm513, %v460
          %515 = vst.msk [vmem:[#allocation3 + $0x8] sm:$0xff] %vm513, %v462
          %516 = vst.msk [vmem:[#allocation3 + $0x10] sm:$0xff] %vm513, %v464
          %517 = vst.msk [vmem:[#allocation3 + $0x18] sm:$0xff] %vm513, %v466
          %518 = vst.msk [vmem:[#allocation3 + $0x20] sm:$0xff] %vm513, %v468
          %519 = vst.msk [vmem:[#allocation3 + $0x28] sm:$0xff] %vm513, %v470
          %520 = vst.msk [vmem:[#allocation3 + $0x30] sm:$0xff] %vm513, %v472
          %521 = vst.msk [vmem:[#allocation3 + $0x38] sm:$0xff] %vm513, %v474
          %522 = vst.msk [vmem:[#allocation3 + $0x40] sm:$0xff] %vm513, %v476
          %523 = vst.msk [vmem:[#allocation3 + $0x48] sm:$0xff] %vm513, %v478
          %524 = vst.msk [vmem:[#allocation3 + $0x50] sm:$0xff] %vm513, %v480
          %525 = vst.msk [vmem:[#allocation3 + $0x58] sm:$0xff] %vm513, %v482
          %526 = vst.msk [vmem:[#allocation3 + $0x60] sm:$0xff] %vm513, %v484
          %527 = vst.msk [vmem:[#allocation3 + $0x68] sm:$0xff] %vm513, %v486
          %528 = vst.msk [vmem:[#allocation3 + $0x70] sm:$0xff] %vm513, %v488
          %529 = vst.msk [vmem:[#allocation3 + $0x78] sm:$0xff] %vm513, %v490
          %530 = vst.msk [vmem:[#allocation3 + $0x80] sm:$0xff] %vm513, %v492
          %531 = vst.msk [vmem:[#allocation3 + $0x88] sm:$0xff] %vm513, %v494
          %v532 = vld [vmem:[#allocation2 + $0x12] sm:$0xff]
          %v533 = vld [vmem:[#allocation2 + $0x1a] sm:$0xff]
          %v534 = vld [vmem:[#allocation2 + $0x22] sm:$0xff]
          %v535 = vld [vmem:[#allocation2 + $0x2a] sm:$0xff]
          %v536 = vld [vmem:[#allocation2 + $0x32] sm:$0xff]
          %v537 = vld [vmem:[#allocation2 + $0x3a] sm:$0xff]
          %v538 = vld [vmem:[#allocation2 + $0x42] sm:$0xff]
          %v539 = vld [vmem:[#allocation2 + $0x4a] sm:$0xff]
          %v540 = vld [vmem:[#allocation2 + $0x52] sm:$0xff]
          %v541 = vld [vmem:[#allocation2 + $0x5a] sm:$0xff]
          %v542 = vld [vmem:[#allocation2 + $0x62] sm:$0xff]
          %v543 = vld [vmem:[#allocation2 + $0x6a] sm:$0xff]
          %v544 = vld [vmem:[#allocation2 + $0x72] sm:$0xff]
          %v545 = vld [vmem:[#allocation2 + $0x7a] sm:$0xff]
          %v546 = vld [vmem:[#allocation2 + $0x82] sm:$0xff]
          %v547 = vld [vmem:[#allocation2 + $0x8a] sm:$0xff]
          %v548 = vld [vmem:[#allocation2 + $0x92] sm:$0xff]
          %v549 = vld [vmem:[#allocation2 + $0x9a] sm:$0xff]
          %568 = vrot.lane.b32.xlu0 %v532, 12
          %v569 = vpop.permute.xlu0 %568
          %570 = vrot.lane.b32.xlu0 %v533, 12
          %v571 = vpop.permute.xlu0 %570
          %572 = vrot.lane.b32.xlu0 %v534, 12
          %v573 = vpop.permute.xlu0 %572
          %574 = vrot.lane.b32.xlu0 %v535, 12
          %v575 = vpop.permute.xlu0 %574
          %576 = vrot.lane.b32.xlu0 %v536, 12
          %v577 = vpop.permute.xlu0 %576
          %578 = vrot.lane.b32.xlu0 %v537, 12
          %v579 = vpop.permute.xlu0 %578
          %580 = vrot.lane.b32.xlu0 %v538, 12
          %v581 = vpop.permute.xlu0 %580
          %582 = vrot.lane.b32.xlu0 %v539, 12
          %v583 = vpop.permute.xlu0 %582
          %584 = vrot.lane.b32.xlu0 %v540, 12
          %v585 = vpop.permute.xlu0 %584
          %586 = vrot.lane.b32.xlu0 %v541, 12
          %v587 = vpop.permute.xlu0 %586
          %588 = vrot.lane.b32.xlu0 %v542, 12
          %v589 = vpop.permute.xlu0 %588
          %590 = vrot.lane.b32.xlu0 %v543, 12
          %v591 = vpop.permute.xlu0 %590
          %592 = vrot.lane.b32.xlu0 %v544, 12
          %v593 = vpop.permute.xlu0 %592
          %594 = vrot.lane.b32.xlu0 %v545, 12
          %v595 = vpop.permute.xlu0 %594
          %596 = vrot.lane.b32.xlu0 %v546, 12
          %v597 = vpop.permute.xlu0 %596
          %598 = vrot.lane.b32.xlu0 %v547, 12
          %v599 = vpop.permute.xlu0 %598
          %600 = vrot.lane.b32.xlu0 %v548, 12
          %v601 = vpop.permute.xlu0 %600
          %602 = vrot.lane.b32.xlu0 %v549, 12
          %v603 = vpop.permute.xlu0 %602
          %vm622 = vcmask 130144
          %623 = vst.msk [vmem:[#allocation3] sm:$0xff] %vm622, %v569
          %624 = vst.msk [vmem:[#allocation3 + $0x8] sm:$0xff] %vm622, %v571
          %625 = vst.msk [vmem:[#allocation3 + $0x10] sm:$0xff] %vm622, %v573
          %626 = vst.msk [vmem:[#allocation3 + $0x18] sm:$0xff] %vm622, %v575
          %627 = vst.msk [vmem:[#allocation3 + $0x20] sm:$0xff] %vm622, %v577
          %628 = vst.msk [vmem:[#allocation3 + $0x28] sm:$0xff] %vm622, %v579
          %629 = vst.msk [vmem:[#allocation3 + $0x30] sm:$0xff] %vm622, %v581
          %630 = vst.msk [vmem:[#allocation3 + $0x38] sm:$0xff] %vm622, %v583
          %631 = vst.msk [vmem:[#allocation3 + $0x40] sm:$0xff] %vm622, %v585
          %632 = vst.msk [vmem:[#allocation3 + $0x48] sm:$0xff] %vm622, %v587
          %633 = vst.msk [vmem:[#allocation3 + $0x50] sm:$0xff] %vm622, %v589
          %634 = vst.msk [vmem:[#allocation3 + $0x58] sm:$0xff] %vm622, %v591
          %635 = vst.msk [vmem:[#allocation3 + $0x60] sm:$0xff] %vm622, %v593
          %636 = vst.msk [vmem:[#allocation3 + $0x68] sm:$0xff] %vm622, %v595
          %637 = vst.msk [vmem:[#allocation3 + $0x70] sm:$0xff] %vm622, %v597
          %638 = vst.msk [vmem:[#allocation3 + $0x78] sm:$0xff] %vm622, %v599
          %639 = vst.msk [vmem:[#allocation3 + $0x80] sm:$0xff] %vm622, %v601
          %640 = vst.msk [vmem:[#allocation3 + $0x88] sm:$0xff] %vm622, %v603
          %v641 = vld [vmem:[#allocation2 + $0x13] sm:$0xff]
          %v642 = vld [vmem:[#allocation2 + $0x1b] sm:$0xff]
          %v643 = vld [vmem:[#allocation2 + $0x23] sm:$0xff]
          %v644 = vld [vmem:[#allocation2 + $0x2b] sm:$0xff]
          %v645 = vld [vmem:[#allocation2 + $0x33] sm:$0xff]
          %v646 = vld [vmem:[#allocation2 + $0x3b] sm:$0xff]
          %v647 = vld [vmem:[#allocation2 + $0x43] sm:$0xff]
          %v648 = vld [vmem:[#allocation2 + $0x4b] sm:$0xff]
          %v649 = vld [vmem:[#allocation2 + $0x53] sm:$0xff]
          %v650 = vld [vmem:[#allocation2 + $0x5b] sm:$0xff]
          %v651 = vld [vmem:[#allocation2 + $0x63] sm:$0xff]
          %v652 = vld [vmem:[#allocation2 + $0x6b] sm:$0xff]
          %v653 = vld [vmem:[#allocation2 + $0x73] sm:$0xff]
          %v654 = vld [vmem:[#allocation2 + $0x7b] sm:$0xff]
          %v655 = vld [vmem:[#allocation2 + $0x83] sm:$0xff]
          %v656 = vld [vmem:[#allocation2 + $0x8b] sm:$0xff]
          %v657 = vld [vmem:[#allocation2 + $0x93] sm:$0xff]
          %v658 = vld [vmem:[#allocation2 + $0x9b] sm:$0xff]
          %677 = vrot.lane.b32.xlu0 %v641, 16
          %v678 = vpop.permute.xlu0 %677
          %679 = vrot.lane.b32.xlu0 %v642, 16
          %v680 = vpop.permute.xlu0 %679
          %681 = vrot.lane.b32.xlu0 %v643, 16
          %v682 = vpop.permute.xlu0 %681
          %683 = vrot.lane.b32.xlu0 %v644, 16
          %v684 = vpop.permute.xlu0 %683
          %685 = vrot.lane.b32.xlu0 %v645, 16
          %v686 = vpop.permute.xlu0 %685
          %687 = vrot.lane.b32.xlu0 %v646, 16
          %v688 = vpop.permute.xlu0 %687
          %689 = vrot.lane.b32.xlu0 %v647, 16
          %v690 = vpop.permute.xlu0 %689
          %691 = vrot.lane.b32.xlu0 %v648, 16
          %v692 = vpop.permute.xlu0 %691
          %693 = vrot.lane.b32.xlu0 %v649, 16
          %v694 = vpop.permute.xlu0 %693
          %695 = vrot.lane.b32.xlu0 %v650, 16
          %v696 = vpop.permute.xlu0 %695
          %697 = vrot.lane.b32.xlu0 %v651, 16
          %v698 = vpop.permute.xlu0 %697
          %699 = vrot.lane.b32.xlu0 %v652, 16
          %v700 = vpop.permute.xlu0 %699
          %701 = vrot.lane.b32.xlu0 %v653, 16
          %v702 = vpop.permute.xlu0 %701
          %703 = vrot.lane.b32.xlu0 %v654, 16
          %v704 = vpop.permute.xlu0 %703
          %705 = vrot.lane.b32.xlu0 %v655, 16
          %v706 = vpop.permute.xlu0 %705
          %707 = vrot.lane.b32.xlu0 %v656, 16
          %v708 = vpop.permute.xlu0 %707
          %709 = vrot.lane.b32.xlu0 %v657, 16
          %v710 = vpop.permute.xlu0 %709
          %711 = vrot.lane.b32.xlu0 %v658, 16
          %v712 = vpop.permute.xlu0 %711
          %vm731 = vcmask 162944
          %732 = vst.msk [vmem:[#allocation3] sm:$0xff] %vm731, %v678
          %733 = vst.msk [vmem:[#allocation3 + $0x8] sm:$0xff] %vm731, %v680
          %734 = vst.msk [vmem:[#allocation3 + $0x10] sm:$0xff] %vm731, %v682
          %735 = vst.msk [vmem:[#allocation3 + $0x18] sm:$0xff] %vm731, %v684
          %736 = vst.msk [vmem:[#allocation3 + $0x20] sm:$0xff] %vm731, %v686
          %737 = vst.msk [vmem:[#allocation3 + $0x28] sm:$0xff] %vm731, %v688
          %738 = vst.msk [vmem:[#allocation3 + $0x30] sm:$0xff] %vm731, %v690
          %739 = vst.msk [vmem:[#allocation3 + $0x38] sm:$0xff] %vm731, %v692
          %740 = vst.msk [vmem:[#allocation3 + $0x40] sm:$0xff] %vm731, %v694
          %741 = vst.msk [vmem:[#allocation3 + $0x48] sm:$0xff] %vm731, %v696
          %742 = vst.msk [vmem:[#allocation3 + $0x50] sm:$0xff] %vm731, %v698
          %743 = vst.msk [vmem:[#allocation3 + $0x58] sm:$0xff] %vm731, %v700
          %744 = vst.msk [vmem:[#allocation3 + $0x60] sm:$0xff] %vm731, %v702
          %745 = vst.msk [vmem:[#allocation3 + $0x68] sm:$0xff] %vm731, %v704
          %746 = vst.msk [vmem:[#allocation3 + $0x70] sm:$0xff] %vm731, %v706
          %747 = vst.msk [vmem:[#allocation3 + $0x78] sm:$0xff] %vm731, %v708
          %748 = vst.msk [vmem:[#allocation3 + $0x80] sm:$0xff] %vm731, %v710
          %749 = vst.msk [vmem:[#allocation3 + $0x88] sm:$0xff] %vm731, %v712
          %v750 = vld [vmem:[#allocation2 + $0x14] sm:$0xff]
          %v751 = vld [vmem:[#allocation2 + $0x1c] sm:$0xff]
          %v752 = vld [vmem:[#allocation2 + $0x24] sm:$0xff]
          %v753 = vld [vmem:[#allocation2 + $0x2c] sm:$0xff]
          %v754 = vld [vmem:[#allocation2 + $0x34] sm:$0xff]
          %v755 = vld [vmem:[#allocation2 + $0x3c] sm:$0xff]
          %v756 = vld [vmem:[#allocation2 + $0x44] sm:$0xff]
          %v757 = vld [vmem:[#allocation2 + $0x4c] sm:$0xff]
          %v758 = vld [vmem:[#allocation2 + $0x54] sm:$0xff]
          %v759 = vld [vmem:[#allocation2 + $0x5c] sm:$0xff]
          %v760 = vld [vmem:[#allocation2 + $0x64] sm:$0xff]
          %v761 = vld [vmem:[#allocation2 + $0x6c] sm:$0xff]
          %v762 = vld [vmem:[#allocation2 + $0x74] sm:$0xff]
          %v763 = vld [vmem:[#allocation2 + $0x7c] sm:$0xff]
          %v764 = vld [vmem:[#allocation2 + $0x84] sm:$0xff]
          %v765 = vld [vmem:[#allocation2 + $0x8c] sm:$0xff]
          %v766 = vld [vmem:[#allocation2 + $0x94] sm:$0xff]
          %v767 = vld [vmem:[#allocation2 + $0x9c] sm:$0xff]
          %786 = vrot.lane.b32.xlu0 %v750, 20
          %v787 = vpop.permute.xlu0 %786
          %788 = vrot.lane.b32.xlu0 %v751, 20
          %v789 = vpop.permute.xlu0 %788
          %790 = vrot.lane.b32.xlu0 %v752, 20
          %v791 = vpop.permute.xlu0 %790
          %792 = vrot.lane.b32.xlu0 %v753, 20
          %v793 = vpop.permute.xlu0 %792
          %794 = vrot.lane.b32.xlu0 %v754, 20
          %v795 = vpop.permute.xlu0 %794
          %796 = vrot.lane.b32.xlu0 %v755, 20
          %v797 = vpop.permute.xlu0 %796
          %798 = vrot.lane.b32.xlu0 %v756, 20
          %v799 = vpop.permute.xlu0 %798
          %800 = vrot.lane.b32.xlu0 %v757, 20
          %v801 = vpop.permute.xlu0 %800
          %802 = vrot.lane.b32.xlu0 %v758, 20
          %v803 = vpop.permute.xlu0 %802
          %804 = vrot.lane.b32.xlu0 %v759, 20
          %v805 = vpop.permute.xlu0 %804
          %806 = vrot.lane.b32.xlu0 %v760, 20
          %v807 = vpop.permute.xlu0 %806
          %808 = vrot.lane.b32.xlu0 %v761, 20
          %v809 = vpop.permute.xlu0 %808
          %810 = vrot.lane.b32.xlu0 %v762, 20
          %v811 = vpop.permute.xlu0 %810
          %812 = vrot.lane.b32.xlu0 %v763, 20
          %v813 = vpop.permute.xlu0 %812
          %814 = vrot.lane.b32.xlu0 %v764, 20
          %v815 = vpop.permute.xlu0 %814
          %816 = vrot.lane.b32.xlu0 %v765, 20
          %v817 = vpop.permute.xlu0 %816
          %818 = vrot.lane.b32.xlu0 %v766, 20
          %v819 = vpop.permute.xlu0 %818
          %820 = vrot.lane.b32.xlu0 %v767, 20
          %v821 = vpop.permute.xlu0 %820
          %vm840 = vcmask 195744
          %841 = vst.msk [vmem:[#allocation3] sm:$0xff] %vm840, %v787
          %842 = vst.msk [vmem:[#allocation3 + $0x8] sm:$0xff] %vm840, %v789
          %843 = vst.msk [vmem:[#allocation3 + $0x10] sm:$0xff] %vm840, %v791
          %844 = vst.msk [vmem:[#allocation3 + $0x18] sm:$0xff] %vm840, %v793
          %845 = vst.msk [vmem:[#allocation3 + $0x20] sm:$0xff] %vm840, %v795
          %846 = vst.msk [vmem:[#allocation3 + $0x28] sm:$0xff] %vm840, %v797
          %847 = vst.msk [vmem:[#allocation3 + $0x30] sm:$0xff] %vm840, %v799
          %848 = vst.msk [vmem:[#allocation3 + $0x38] sm:$0xff] %vm840, %v801
          %849 = vst.msk [vmem:[#allocation3 + $0x40] sm:$0xff] %vm840, %v803
          %850 = vst.msk [vmem:[#allocation3 + $0x48] sm:$0xff] %vm840, %v805
          %851 = vst.msk [vmem:[#allocation3 + $0x50] sm:$0xff] %vm840, %v807
          %852 = vst.msk [vmem:[#allocation3 + $0x58] sm:$0xff] %vm840, %v809
          %853 = vst.msk [vmem:[#allocation3 + $0x60] sm:$0xff] %vm840, %v811
          %854 = vst.msk [vmem:[#allocation3 + $0x68] sm:$0xff] %vm840, %v813
          %855 = vst.msk [vmem:[#allocation3 + $0x70] sm:$0xff] %vm840, %v815
          %856 = vst.msk [vmem:[#allocation3 + $0x78] sm:$0xff] %vm840, %v817
          %857 = vst.msk [vmem:[#allocation3 + $0x80] sm:$0xff] %vm840, %v819
          %858 = vst.msk [vmem:[#allocation3 + $0x88] sm:$0xff] %vm840, %v821
          %v859 = vld [vmem:[#allocation2 + $0x24] sm:$0xff]
          %v860 = vld [vmem:[#allocation2 + $0x2c] sm:$0xff]
          %v861 = vld [vmem:[#allocation2 + $0x34] sm:$0xff]
          %v862 = vld [vmem:[#allocation2 + $0x3c] sm:$0xff]
          %v863 = vld [vmem:[#allocation2 + $0x44] sm:$0xff]
          %v864 = vld [vmem:[#allocation2 + $0x4c] sm:$0xff]
          %v865 = vld [vmem:[#allocation2 + $0x54] sm:$0xff]
          %v866 = vld [vmem:[#allocation2 + $0x5c] sm:$0xff]
          %v867 = vld [vmem:[#allocation2 + $0x64] sm:$0xff]
          %v868 = vld [vmem:[#allocation2 + $0x6c] sm:$0xff]
          %v869 = vld [vmem:[#allocation2 + $0x74] sm:$0xff]
          %v870 = vld [vmem:[#allocation2 + $0x7c] sm:$0xff]
          %v871 = vld [vmem:[#allocation2 + $0x84] sm:$0xff]
          %v872 = vld [vmem:[#allocation2 + $0x8c] sm:$0xff]
          %v873 = vld [vmem:[#allocation2 + $0x94] sm:$0xff]
          %v874 = vld [vmem:[#allocation2 + $0x9c] sm:$0xff]
          %v875 = vld [vmem:[#allocation2 + $0xa4] sm:$0xff]
          %v876 = vld [vmem:[#allocation2 + $0xac] sm:$0xff]
          %895 = vrot.lane.b32.xlu0 %v859, 24
          %v896 = vpop.permute.xlu0 %895
          %897 = vrot.lane.b32.xlu0 %v860, 24
          %v898 = vpop.permute.xlu0 %897
          %899 = vrot.lane.b32.xlu0 %v861, 24
          %v900 = vpop.permute.xlu0 %899
          %901 = vrot.lane.b32.xlu0 %v862, 24
          %v902 = vpop.permute.xlu0 %901
          %903 = vrot.lane.b32.xlu0 %v863, 24
          %v904 = vpop.permute.xlu0 %903
          %905 = vrot.lane.b32.xlu0 %v864, 24
          %v906 = vpop.permute.xlu0 %905
          %907 = vrot.lane.b32.xlu0 %v865, 24
          %v908 = vpop.permute.xlu0 %907
          %909 = vrot.lane.b32.xlu0 %v866, 24
          %v910 = vpop.permute.xlu0 %909
          %911 = vrot.lane.b32.xlu0 %v867, 24
          %v912 = vpop.permute.xlu0 %911
          %913 = vrot.lane.b32.xlu0 %v868, 24
          %v914 = vpop.permute.xlu0 %913
          %915 = vrot.lane.b32.xlu0 %v869, 24
          %v916 = vpop.permute.xlu0 %915
          %917 = vrot.lane.b32.xlu0 %v870, 24
          %v918 = vpop.permute.xlu0 %917
          %919 = vrot.lane.b32.xlu0 %v871, 24
          %v920 = vpop.permute.xlu0 %919
          %921 = vrot.lane.b32.xlu0 %v872, 24
          %v922 = vpop.permute.xlu0 %921
          %923 = vrot.lane.b32.xlu0 %v873, 24
          %v924 = vpop.permute.xlu0 %923
          %925 = vrot.lane.b32.xlu0 %v874, 24
          %v926 = vpop.permute.xlu0 %925
          %927 = vrot.lane.b32.xlu0 %v875, 24
          %v928 = vpop.permute.xlu0 %927
          %929 = vrot.lane.b32.xlu0 %v876, 24
          %v930 = vpop.permute.xlu0 %929
          %vm949 = vcmask 228544
          %950 = vst.msk [vmem:[#allocation3] sm:$0xff] %vm949, %v896
          %951 = vst.msk [vmem:[#allocation3 + $0x8] sm:$0xff] %vm949, %v898
          %952 = vst.msk [vmem:[#allocation3 + $0x10] sm:$0xff] %vm949, %v900
          %953 = vst.msk [vmem:[#allocation3 + $0x18] sm:$0xff] %vm949, %v902
          %954 = vst.msk [vmem:[#allocation3 + $0x20] sm:$0xff] %vm949, %v904
          %955 = vst.msk [vmem:[#allocation3 + $0x28] sm:$0xff] %vm949, %v906
          %956 = vst.msk [vmem:[#allocation3 + $0x30] sm:$0xff] %vm949, %v908
          %957 = vst.msk [vmem:[#allocation3 + $0x38] sm:$0xff] %vm949, %v910
          %958 = vst.msk [vmem:[#allocation3 + $0x40] sm:$0xff] %vm949, %v912
          %959 = vst.msk [vmem:[#allocation3 + $0x48] sm:$0xff] %vm949, %v914
          %960 = vst.msk [vmem:[#allocation3 + $0x50] sm:$0xff] %vm949, %v916
          %961 = vst.msk [vmem:[#allocation3 + $0x58] sm:$0xff] %vm949, %v918
          %962 = vst.msk [vmem:[#allocation3 + $0x60] sm:$0xff] %vm949, %v920
          %963 = vst.msk [vmem:[#allocation3 + $0x68] sm:$0xff] %vm949, %v922
          %964 = vst.msk [vmem:[#allocation3 + $0x70] sm:$0xff] %vm949, %v924
          %965 = vst.msk [vmem:[#allocation3 + $0x78] sm:$0xff] %vm949, %v926
          %966 = vst.msk [vmem:[#allocation3 + $0x80] sm:$0xff] %vm949, %v928
          %967 = vst.msk [vmem:[#allocation3 + $0x88] sm:$0xff] %vm949, %v930
          %v968 = vld [vmem:[#allocation2 + $0x25] sm:$0xff]
          %v969 = vld [vmem:[#allocation2 + $0x2d] sm:$0xff]
          %v970 = vld [vmem:[#allocation2 + $0x35] sm:$0xff]
          %v971 = vld [vmem:[#allocation2 + $0x3d] sm:$0xff]
          %v972 = vld [vmem:[#allocation2 + $0x45] sm:$0xff]
          %v973 = vld [vmem:[#allocation2 + $0x4d] sm:$0xff]
          %v974 = vld [vmem:[#allocation2 + $0x55] sm:$0xff]
          %v975 = vld [vmem:[#allocation2 + $0x5d] sm:$0xff]
          %v976 = vld [vmem:[#allocation2 + $0x65] sm:$0xff]
          %v977 = vld [vmem:[#allocation2 + $0x6d] sm:$0xff]
          %v978 = vld [vmem:[#allocation2 + $0x75] sm:$0xff]
          %v979 = vld [vmem:[#allocation2 + $0x7d] sm:$0xff]
          %v980 = vld [vmem:[#allocation2 + $0x85] sm:$0xff]
          %v981 = vld [vmem:[#allocation2 + $0x8d] sm:$0xff]
          %v982 = vld [vmem:[#allocation2 + $0x95] sm:$0xff]
          %v983 = vld [vmem:[#allocation2 + $0x9d] sm:$0xff]
          %v984 = vld [vmem:[#allocation2 + $0xa5] sm:$0xff]
          %v985 = vld [vmem:[#allocation2 + $0xad] sm:$0xff]
          %1004 = vrot.lane.b32.xlu0 %v968, 28
          %v1005 = vpop.permute.xlu0 %1004
          %1006 = vrot.lane.b32.xlu0 %v969, 28
          %v1007 = vpop.permute.xlu0 %1006
          %1008 = vrot.lane.b32.xlu0 %v970, 28
          %v1009 = vpop.permute.xlu0 %1008
          %1010 = vrot.lane.b32.xlu0 %v971, 28
          %v1011 = vpop.permute.xlu0 %1010
          %1012 = vrot.lane.b32.xlu0 %v972, 28
          %v1013 = vpop.permute.xlu0 %1012
          %1014 = vrot.lane.b32.xlu0 %v973, 28
          %v1015 = vpop.permute.xlu0 %1014
          %1016 = vrot.lane.b32.xlu0 %v974, 28
          %v1017 = vpop.permute.xlu0 %1016
          %1018 = vrot.lane.b32.xlu0 %v975, 28
          %v1019 = vpop.permute.xlu0 %1018
          %1020 = vrot.lane.b32.xlu0 %v976, 28
          %v1021 = vpop.permute.xlu0 %1020
          %1022 = vrot.lane.b32.xlu0 %v977, 28
          %v1023 = vpop.permute.xlu0 %1022
          %1024 = vrot.lane.b32.xlu0 %v978, 28
          %v1025 = vpop.permute.xlu0 %1024
          %1026 = vrot.lane.b32.xlu0 %v979, 28
          %v1027 = vpop.permute.xlu0 %1026
          %1028 = vrot.lane.b32.xlu0 %v980, 28
          %v1029 = vpop.permute.xlu0 %1028
          %1030 = vrot.lane.b32.xlu0 %v981, 28
          %v1031 = vpop.permute.xlu0 %1030
          %1032 = vrot.lane.b32.xlu0 %v982, 28
          %v1033 = vpop.permute.xlu0 %1032
          %1034 = vrot.lane.b32.xlu0 %v983, 28
          %v1035 = vpop.permute.xlu0 %1034
          %1036 = vrot.lane.b32.xlu0 %v984, 28
          %v1037 = vpop.permute.xlu0 %1036
          %1038 = vrot.lane.b32.xlu0 %v985, 28
          %v1039 = vpop.permute.xlu0 %1038
          %vm1058 = vcmask 261344
          %1059 = vst.msk [vmem:[#allocation3] sm:$0xff] %vm1058, %v1005
          %1060 = vst.msk [vmem:[#allocation3 + $0x8] sm:$0xff] %vm1058, %v1007
          %1061 = vst.msk [vmem:[#allocation3 + $0x10] sm:$0xff] %vm1058, %v1009
          %1062 = vst.msk [vmem:[#allocation3 + $0x18] sm:$0xff] %vm1058, %v1011
          %1063 = vst.msk [vmem:[#allocation3 + $0x20] sm:$0xff] %vm1058, %v1013
          %1064 = vst.msk [vmem:[#allocation3 + $0x28] sm:$0xff] %vm1058, %v1015
          %1065 = vst.msk [vmem:[#allocation3 + $0x30] sm:$0xff] %vm1058, %v1017
          %1066 = vst.msk [vmem:[#allocation3 + $0x38] sm:$0xff] %vm1058, %v1019
          %1067 = vst.msk [vmem:[#allocation3 + $0x40] sm:$0xff] %vm1058, %v1021
          %1068 = vst.msk [vmem:[#allocation3 + $0x48] sm:$0xff] %vm1058, %v1023
          %1069 = vst.msk [vmem:[#allocation3 + $0x50] sm:$0xff] %vm1058, %v1025
          %1070 = vst.msk [vmem:[#allocation3 + $0x58] sm:$0xff] %vm1058, %v1027
          %1071 = vst.msk [vmem:[#allocation3 + $0x60] sm:$0xff] %vm1058, %v1029
          %1072 = vst.msk [vmem:[#allocation3 + $0x68] sm:$0xff] %vm1058, %v1031
          %1073 = vst.msk [vmem:[#allocation3 + $0x70] sm:$0xff] %vm1058, %v1033
          %1074 = vst.msk [vmem:[#allocation3 + $0x78] sm:$0xff] %vm1058, %v1035
          %1075 = vst.msk [vmem:[#allocation3 + $0x80] sm:$0xff] %vm1058, %v1037
          %1076 = vst.msk [vmem:[#allocation3 + $0x88] sm:$0xff] %vm1058, %v1039
          %v1077 = vld [vmem:[#allocation2 + $0x26] sm:$0xff]
          %v1078 = vld [vmem:[#allocation2 + $0x2e] sm:$0xff]
          %v1079 = vld [vmem:[#allocation2 + $0x36] sm:$0xff]
          %v1080 = vld [vmem:[#allocation2 + $0x3e] sm:$0xff]
          %v1081 = vld [vmem:[#allocation2 + $0x46] sm:$0xff]
          %v1082 = vld [vmem:[#allocation2 + $0x4e] sm:$0xff]
          %v1083 = vld [vmem:[#allocation2 + $0x56] sm:$0xff]
          %v1084 = vld [vmem:[#allocation2 + $0x5e] sm:$0xff]
          %v1085 = vld [vmem:[#allocation2 + $0x66] sm:$0xff]
          %v1086 = vld [vmem:[#allocation2 + $0x6e] sm:$0xff]
          %v1087 = vld [vmem:[#allocation2 + $0x76] sm:$0xff]
          %v1088 = vld [vmem:[#allocation2 + $0x7e] sm:$0xff]
          %v1089 = vld [vmem:[#allocation2 + $0x86] sm:$0xff]
          %v1090 = vld [vmem:[#allocation2 + $0x8e] sm:$0xff]
          %v1091 = vld [vmem:[#allocation2 + $0x96] sm:$0xff]
          %v1092 = vld [vmem:[#allocation2 + $0x9e] sm:$0xff]
          %v1093 = vld [vmem:[#allocation2 + $0xa6] sm:$0xff]
          %v1094 = vld [vmem:[#allocation2 + $0xae] sm:$0xff]
          %1113 = vrot.lane.b32.xlu0 %v1077, 32
          %v1114 = vpop.permute.xlu0 %1113
          %1115 = vrot.lane.b32.xlu0 %v1078, 32
          %v1116 = vpop.permute.xlu0 %1115
          %1117 = vrot.lane.b32.xlu0 %v1079, 32
          %v1118 = vpop.permute.xlu0 %1117
          %1119 = vrot.lane.b32.xlu0 %v1080, 32
          %v1120 = vpop.permute.xlu0 %1119
          %1121 = vrot.lane.b32.xlu0 %v1081, 32
          %v1122 = vpop.permute.xlu0 %1121
          %1123 = vrot.lane.b32.xlu0 %v1082, 32
          %v1124 = vpop.permute.xlu0 %1123
          %1125 = vrot.lane.b32.xlu0 %v1083, 32
          %v1126 = vpop.permute.xlu0 %1125
          %1127 = vrot.lane.b32.xlu0 %v1084, 32
          %v1128 = vpop.permute.xlu0 %1127
          %1129 = vrot.lane.b32.xlu0 %v1085, 32
          %v1130 = vpop.permute.xlu0 %1129
          %1131 = vrot.lane.b32.xlu0 %v1086, 32
          %v1132 = vpop.permute.xlu0 %1131
          %1133 = vrot.lane.b32.xlu0 %v1087, 32
          %v1134 = vpop.permute.xlu0 %1133
          %1135 = vrot.lane.b32.xlu0 %v1088, 32
          %v1136 = vpop.permute.xlu0 %1135
          %1137 = vrot.lane.b32.xlu0 %v1089, 32
          %v1138 = vpop.permute.xlu0 %1137
          %1139 = vrot.lane.b32.xlu0 %v1090, 32
          %v1140 = vpop.permute.xlu0 %1139
          %1141 = vrot.lane.b32.xlu0 %v1091, 32
          %v1142 = vpop.permute.xlu0 %1141
          %1143 = vrot.lane.b32.xlu0 %v1092, 32
          %v1144 = vpop.permute.xlu0 %1143
          %1145 = vrot.lane.b32.xlu0 %v1093, 32
          %v1146 = vpop.permute.xlu0 %1145
          %1147 = vrot.lane.b32.xlu0 %v1094, 32
          %v1148 = vpop.permute.xlu0 %1147
          %vm1167 = vcmask 294144
          %1168 = vst.msk [vmem:[#allocation3] sm:$0xff] %vm1167, %v1114
          %1169 = vst.msk [vmem:[#allocation3 + $0x8] sm:$0xff] %vm1167, %v1116
          %1170 = vst.msk [vmem:[#allocation3 + $0x10] sm:$0xff] %vm1167, %v1118
          %1171 = vst.msk [vmem:[#allocation3 + $0x18] sm:$0xff] %vm1167, %v1120
          %1172 = vst.msk [vmem:[#allocation3 + $0x20] sm:$0xff] %vm1167, %v1122
          %1173 = vst.msk [vmem:[#allocation3 + $0x28] sm:$0xff] %vm1167, %v1124
          %1174 = vst.msk [vmem:[#allocation3 + $0x30] sm:$0xff] %vm1167, %v1126
          %1175 = vst.msk [vmem:[#allocation3 + $0x38] sm:$0xff] %vm1167, %v1128
          %1176 = vst.msk [vmem:[#allocation3 + $0x40] sm:$0xff] %vm1167, %v1130
          %1177 = vst.msk [vmem:[#allocation3 + $0x48] sm:$0xff] %vm1167, %v1132
          %1178 = vst.msk [vmem:[#allocation3 + $0x50] sm:$0xff] %vm1167, %v1134
          %1179 = vst.msk [vmem:[#allocation3 + $0x58] sm:$0xff] %vm1167, %v1136
          %1180 = vst.msk [vmem:[#allocation3 + $0x60] sm:$0xff] %vm1167, %v1138
          %1181 = vst.msk [vmem:[#allocation3 + $0x68] sm:$0xff] %vm1167, %v1140
          %1182 = vst.msk [vmem:[#allocation3 + $0x70] sm:$0xff] %vm1167, %v1142
          %1183 = vst.msk [vmem:[#allocation3 + $0x78] sm:$0xff] %vm1167, %v1144
          %1184 = vst.msk [vmem:[#allocation3 + $0x80] sm:$0xff] %vm1167, %v1146
          %1185 = vst.msk [vmem:[#allocation3 + $0x88] sm:$0xff] %vm1167, %v1148
        $region32: #{tpu_custom_call.1} parent=27 // pred_fallthru
          _
        %v1186 = vld [vmem:[#allocation3] sm:$0xff]
        %v1187 = vld [vmem:[#allocation3 + $0x8] sm:$0xff]
        %v1188 = vld [vmem:[#allocation3 + $0x10] sm:$0xff]
        %v1189 = vld [vmem:[#allocation3 + $0x18] sm:$0xff]
        %v1190 = vld [vmem:[#allocation3 + $0x20] sm:$0xff]
        %v1191 = vld [vmem:[#allocation3 + $0x28] sm:$0xff]
        %v1192 = vld [vmem:[#allocation3 + $0x30] sm:$0xff]
        %v1193 = vld [vmem:[#allocation3 + $0x38] sm:$0xff]
        %v1194 = vld [vmem:[#allocation3 + $0x40] sm:$0xff]
        %v1195 = vld [vmem:[#allocation3 + $0x48] sm:$0xff]
        %v1196 = vld [vmem:[#allocation3 + $0x50] sm:$0xff]
        %v1197 = vld [vmem:[#allocation3 + $0x58] sm:$0xff]
        %v1198 = vld [vmem:[#allocation3 + $0x60] sm:$0xff]
        %v1199 = vld [vmem:[#allocation3 + $0x68] sm:$0xff]
        %v1200 = vld [vmem:[#allocation3 + $0x70] sm:$0xff]
        %v1201 = vld [vmem:[#allocation3 + $0x78] sm:$0xff]
        %v1202 = vld [vmem:[#allocation3 + $0x80] sm:$0xff]
        %v1203 = vld [vmem:[#allocation3 + $0x88] sm:$0xff]
        %v1204 = vpack.c.bf16 %v1187, %v1186
        %v1205 = vpack.c.bf16 %v1189, %v1188
        %v1206 = vpack.c.bf16 %v1191, %v1190
        %v1207 = vpack.c.bf16 %v1193, %v1192
        %v1208 = vpack.c.bf16 %v1195, %v1194
        %v1209 = vpack.c.bf16 %v1197, %v1196
        %v1210 = vpack.c.bf16 %v1199, %v1198
        %v1211 = vpack.c.bf16 %v1201, %v1200
        %v1212 = vpack.c.bf16 %v1203, %v1202
        %v1213 = vld [vmem:[%s195] sm:$0xf]
        %v1214 = vld [vmem:[%s195 + $0x4] sm:$0xf]
        %v1215 = vld [vmem:[%s195 + $0x8] sm:$0xf]
        %v1216 = vld [vmem:[%s195 + $0xc] sm:$0xf]
        %v1217 = vld [vmem:[%s195 + $0x10] sm:$0x3]
        %v1223 = vunpack.c.l.b16 %v1213
        %v1224 = vunpack.c.l.b16 %v1214
        %v1225 = vunpack.c.l.b16 %v1215
        %v1226 = vunpack.c.l.b16 %v1216
        %v1227 = vunpack.c.l.b16 %v1217
        %v1228 = vpack.c.b16 %v1224, %v1223
        %v1229 = vpack.c.b16 %v1226, %v1225
        %v1230 = vpack.c.b16 %v1227, %v1227
        %vm1233 = vcmask 293888
        %v1235 = vsel %vm1233, %v1204, 0
        %v1238 = vsel %vm1233, %v1205, 0
        %v1241 = vsel %vm1233, %v1206, 0
        %v1244 = vsel %vm1233, %v1207, 0
        %v1247 = vsel %vm1233, %v1208, 0
        %v1250 = vsel %vm1233, %v1209, 0
        %v1253 = vsel %vm1233, %v1210, 0
        %v1256 = vsel %vm1233, %v1211, 0
        %v1259 = vsel %vm1233, %v1212, 0
        %vm1261 = vcmask 1041408
        %v1263 = vsel %vm1261, %v1230, 0
        %1265 = vmatprep.subr.bf16.mxu0 0
        %1266 = vmatpush1.bf16.msra.mxu0 %v1228
        %1267 = vmatprep.subr.bf16.mxu0 0
        %1268 = vmatpush1.bf16.msra.mxu0 %v1229
        %1269 = vmatprep.subr.bf16.mxu0 0
        %1270 = vmatpush1.bf16.msra.mxu0 %v1263
        %1271 = vmatprep.subr.bf16.mxu0 0
        %1272 = vmatpush1.bf16.msra.mxu0 0
        %1273 = vmatprep.subr.bf16.mxu0 0
        %1274 = vmatpush1.bf16.msra.mxu0 0
        %1275 = vmatprep.subr.bf16.mxu0 0
        %1276 = vmatpush1.bf16.msra.mxu0 0
        %1277 = vmatprep.subr.bf16.mxu0 0
        %1278 = vmatpush1.bf16.msra.mxu0 0
        %1279 = vmatprep.subr.bf16.mxu0 0
        %1280 = vmatpush1.bf16.msra.mxu0 0
        %1281 = vmatprep.subr.bf16.mxu0 0
        %1282 = vmatpush1.bf16.msra.mxu0 0
        %1283 = vmatprep.subr.bf16.mxu0 0
        %1284 = vmatpush1.bf16.msra.mxu0 0
        %1285 = vmatprep.subr.bf16.mxu0 0
        %1286 = vmatpush1.bf16.msra.mxu0 0
        %1287 = vmatprep.subr.bf16.mxu0 0
        %1288 = vmatpush1.bf16.msra.mxu0 0
        %1289 = vmatprep.subr.bf16.mxu0 0
        %1290 = vmatpush1.bf16.msra.mxu0 0
        %1291 = vmatprep.subr.bf16.mxu0 0
        %1292 = vmatpush1.bf16.msra.mxu0 0
        %1293 = vmatprep.subr.bf16.mxu0 0
        %1294 = vmatpush1.bf16.msra.mxu0 0
        %1295 = vmatprep.subr.bf16.mxu0 0
        %1296 = vmatpush1.bf16.msra.mxu0 0
        %1297 = vmatprep.mubr.bf16.mxu0 0
        %1298 = vmatmul.mubr.bf16.gmra.mrb[0].mxu0 %v1235
        %v1299 = vpop.f32.mrb[0].mxu0
        %v1300 = vadd.f32 0.0, %v1299
        %v1301 = vpop.f32.mrb[0].mxu0
        %v1302 = vpop.f32.mrb[0].mxu0
        %v1303 = vadd.f32 0.0, %v1302
        %v1304 = vpop.f32.mrb[0].mxu0
        %1305 = vmatprep.mubr.bf16.mxu0 0
        %1306 = vmatmul.mubr.bf16.gmra.mrb[0].mxu0 %v1238
        %v1307 = vpop.f32.mrb[0].mxu0
        %v1308 = vadd.f32 0.0, %v1307
        %v1309 = vpop.f32.mrb[0].mxu0
        %v1310 = vpop.f32.mrb[0].mxu0
        %v1311 = vadd.f32 0.0, %v1310
        %v1312 = vpop.f32.mrb[0].mxu0
        %1313 = vmatprep.mubr.bf16.mxu0 0
        %1314 = vmatmul.mubr.bf16.gmra.mrb[0].mxu0 %v1241
        %v1315 = vpop.f32.mrb[0].mxu0
        %v1316 = vadd.f32 0.0, %v1315
        %v1317 = vpop.f32.mrb[0].mxu0
        %v1318 = vpop.f32.mrb[0].mxu0
        %v1319 = vadd.f32 0.0, %v1318
        %v1320 = vpop.f32.mrb[0].mxu0
        %1321 = vmatprep.mubr.bf16.mxu0 0
        %1322 = vmatmul.mubr.bf16.gmra.mrb[0].mxu0 %v1244
        %v1323 = vpop.f32.mrb[0].mxu0
        %v1324 = vadd.f32 0.0, %v1323
        %v1325 = vpop.f32.mrb[0].mxu0
        %v1326 = vpop.f32.mrb[0].mxu0
        %v1327 = vadd.f32 0.0, %v1326
        %v1328 = vpop.f32.mrb[0].mxu0
        %1329 = vmatprep.mubr.bf16.mxu0 0
        %1330 = vmatmul.mubr.bf16.gmra.mrb[0].mxu0 %v1247
        %v1331 = vpop.f32.mrb[0].mxu0
        %v1332 = vadd.f32 0.0, %v1331
        %v1333 = vpop.f32.mrb[0].mxu0
        %v1334 = vpop.f32.mrb[0].mxu0
        %v1335 = vadd.f32 0.0, %v1334
        %v1336 = vpop.f32.mrb[0].mxu0
        %1337 = vmatprep.mubr.bf16.mxu0 0
        %1338 = vmatmul.mubr.bf16.gmra.mrb[0].mxu0 %v1250
        %v1339 = vpop.f32.mrb[0].mxu0
        %v1340 = vadd.f32 0.0, %v1339
        %v1341 = vpop.f32.mrb[0].mxu0
        %v1342 = vpop.f32.mrb[0].mxu0
        %v1343 = vadd.f32 0.0, %v1342
        %v1344 = vpop.f32.mrb[0].mxu0
        %1345 = vmatprep.mubr.bf16.mxu0 0
        %1346 = vmatmul.mubr.bf16.gmra.mrb[0].mxu0 %v1253
        %v1347 = vpop.f32.mrb[0].mxu0
        %v1348 = vadd.f32 0.0, %v1347
        %v1349 = vpop.f32.mrb[0].mxu0
        %v1350 = vpop.f32.mrb[0].mxu0
        %v1351 = vadd.f32 0.0, %v1350
        %v1352 = vpop.f32.mrb[0].mxu0
        %1353 = vmatprep.mubr.bf16.mxu0 0
        %1354 = vmatmul.mubr.bf16.gmra.mrb[0].mxu0 %v1256
        %v1355 = vpop.f32.mrb[0].mxu0
        %v1356 = vadd.f32 0.0, %v1355
        %v1357 = vpop.f32.mrb[0].mxu0
        %v1358 = vpop.f32.mrb[0].mxu0
        %v1359 = vadd.f32 0.0, %v1358
        %v1360 = vpop.f32.mrb[0].mxu0
        %1361 = vmatprep.mubr.bf16.mxu0 0
        %1362 = vmatmul.mubr.bf16.gmra.mrb[0].mxu0 %v1259
        %v1363 = vpop.f32.mrb[0].mxu0
        %v1364 = vadd.f32 0.0, %v1363
        %v1365 = vpop.f32.mrb[0].mxu0
        %v1366 = vpop.f32.mrb[0].mxu0
        %v1367 = vadd.f32 0.0, %v1366
        %v1368 = vpop.f32.mrb[0].mxu0
        %1369 = vdwg.mxu0
        %v1370 = vmax.f32 %v1300, 0.0
        %v1371 = vmax.f32 %v1303, 0.0
        %v1372 = vmax.f32 %v1308, 0.0
        %v1373 = vmax.f32 %v1311, 0.0
        %v1374 = vmax.f32 %v1316, 0.0
        %v1375 = vmax.f32 %v1319, 0.0
        %v1376 = vmax.f32 %v1324, 0.0
        %v1377 = vmax.f32 %v1327, 0.0
        %v1378 = vmax.f32 %v1332, 0.0
        %v1379 = vmax.f32 %v1335, 0.0
        %v1380 = vmax.f32 %v1340, 0.0
        %v1381 = vmax.f32 %v1343, 0.0
        %v1382 = vmax.f32 %v1348, 0.0
        %v1383 = vmax.f32 %v1351, 0.0
        %v1384 = vmax.f32 %v1356, 0.0
        %v1385 = vmax.f32 %v1359, 0.0
        %v1386 = vmax.f32 %v1364, 0.0
        %v1387 = vmax.f32 %v1367, 0.0
        %1388 = vst [vmem:[%s182] sm:$0xff] %v1370
        %1389 = vst [vmem:[%s182 + $0x8] sm:$0xff] %v1371
        %1390 = vst [vmem:[%s182 + $0x10] sm:$0xff] %v1372
        %1391 = vst [vmem:[%s182 + $0x18] sm:$0xff] %v1373
        %1392 = vst [vmem:[%s182 + $0x20] sm:$0xff] %v1374
        %1393 = vst [vmem:[%s182 + $0x28] sm:$0xff] %v1375
        %1394 = vst [vmem:[%s182 + $0x30] sm:$0xff] %v1376
        %1395 = vst [vmem:[%s182 + $0x38] sm:$0xff] %v1377
        %1396 = vst [vmem:[%s182 + $0x40] sm:$0xff] %v1378
        %1397 = vst [vmem:[%s182 + $0x48] sm:$0xff] %v1379
        %1398 = vst [vmem:[%s182 + $0x50] sm:$0xff] %v1380
        %1399 = vst [vmem:[%s182 + $0x58] sm:$0xff] %v1381
        %1400 = vst [vmem:[%s182 + $0x60] sm:$0xff] %v1382
        %1401 = vst [vmem:[%s182 + $0x68] sm:$0xff] %v1383
        %1402 = vst [vmem:[%s182 + $0x70] sm:$0xff] %v1384
        %1403 = vst [vmem:[%s182 + $0x78] sm:$0xff] %v1385
        %1404 = vst [vmem:[%s182 + $0x80] sm:$0xff] %v1386
        %1405 = vst [vmem:[%s182 + $0x88] sm:$0xff] %v1387
        %s1406 = sand.u32 %s101, 1
        %s1407 = scalar_lea.sflag [#allocation5], %s1406
        %s1408 = sand.u32 %s101, 1
        %s1409 = smul.addr %s1408, 144
        %s1410 = scalar_lea.vmem [#allocation4], %s1409
        // Predicated region
        $region33: #{tpu_custom_call.1} parent=27 // pred_check
          %p1411 = pneg %p111
        $region34: #{tpu_custom_call.1} parent=27 // pred_check_branch
          %1413 = sbr.rel (%p1411) target = $region36
        $region35: #{tpu_custom_call.1} parent=27 // pred_region
          %s1415 = ssub.s32 2304, 2304
          %1416 = vsyncadd %s1407, %s1415
          %s1417 = smul.addr %s22, 18
          %s1418 = sadd.s32 %s23, %s1417
          %s1419 = smul.addr %s21, 36
          %s1420 = sadd.s32 %s1418, %s1419
          %s1421 = smul.addr %s1420, 128
          %s1422 = scalar_lea.hbm %s2, %s1421
          %s1423 = sshll.u32 %s1410, 4
          %s1424 = int_to_ptr.vmem [resolvable:$true] %s1423
          %1429 = dma.vmem_to_hbm [thread:$0]  %s1424, 2304, %s1422, %s1407, 128, 128, 8
        $region36: #{tpu_custom_call.1} parent=27 // pred_fallthru
          _
      $region28: #{tpu_custom_call.1} parent=5 // pred_fallthru
        _
      %p1430 = scmp.le.s32.totalorder 2, %s11
      // Predicated region
      $region37: #{tpu_custom_call.1} parent=5 // pred_check
        %p1431 = pneg %p1430
      $region38: #{tpu_custom_call.1} parent=5 // pred_check_branch
        %1433 = sbr.rel (%p1431) target = $region40
      $region39: #{tpu_custom_call.1} parent=5 // pred_region
        %s1434 = ssub.s32 %s11, 2
        // Predicated region
        $region41: #{tpu_custom_call.1} parent=39 // pred_check
          %p1435 = pneg %p117
        $region42: #{tpu_custom_call.1} parent=39 // pred_check_branch
          %1437 = sbr.rel (%p1435) target = $region44
        $region43: #{tpu_custom_call.1} parent=39 // pred_region
          %s1438 = sand.u32 %s102, 1
          %s1439 = scalar_lea.sflag [#allocation5], %s1438
          %s1440 = sand.u32 %s102, 1
          %s1441 = smul.addr %s1440, 144
          %s1442 = scalar_lea.vmem [#allocation4], %s1441
          %1443 = dma.done %s1439, 2304
        $region44: #{tpu_custom_call.1} parent=39 // pred_fallthru
          _
      $region40: #{tpu_custom_call.1} parent=5 // pred_fallthru
        _
    $region6: #{tpu_custom_call.1} parent=1 // loop_footer
      %s15 = sadd.s32 1, %s11
    $region7: #{tpu_custom_call.1} parent=1 // loop_footer_branch
      %10 = sbr.rel target = $region3
    $region8: #{tpu_custom_call.1} parent=1 // loop_exit
      _
    %1444 = vsyncpa [#allocation5], 1
    %s1445 = scalar_lea.sflag [#allocation5], 1
    %1446 = vsyncpa %s1445, 1

</llo_original>
